<compile_context>
chip_gen: v7x
topology: tpu7x:2x2x1
jax: 0.10.0
libtpu: 0.0.40
codegen_flags: <defaults>
</compile_context>

<pallas_src>
import functools

import numpy as np
import jax
import jax.numpy as jnp
from jax.experimental import pallas as pl
from jax.experimental.pallas import tpu as pltpu

LANE = 128      # every feature / hidden / logit row is one full vreg of lanes
_NEG = -1e9     # bias for padded logit lanes; exp(-1e9 - m) underflows to 0


def _policy_kernel(x_ref, w_ref, out_ref):
    x = x_ref[...]                                     # (Bt, 128): board + const-1 lane

    # Static row slices of the VMEM-resident weight pack (8-aligned, zero cost).
    w_conv = w_ref[0 * LANE:1 * LANE, :]               # (128, 128) conv-as-matmul (+bias)
    w_fc1 = w_ref[1 * LANE:3 * LANE, :]                # (256, 128) fused fc1 (+bias, +const)
    w_fc2 = w_ref[3 * LANE:4 * LANE, :]                # (128, 128) fc2 (+bias, +const)
    w_fc3 = w_ref[4 * LANE:5 * LANE, :]                # (128, 128) fc3 (+bias, -1e9 pads)

    # conv2d(1->C, k=2, valid) + bias + relu, in PyTorch-flattened (c*nsp+s) layout.
    conv = jnp.maximum(
        jnp.dot(x, w_conv, preferred_element_type=jnp.float32), 0.0)   # (Bt, 128)

    # fc1 over concat(relu(conv_flat), x_flat): single K=256 MXU contraction.
    lhs = jnp.concatenate([conv, x], axis=-1)                           # (Bt, 256)
    h1 = jnp.maximum(
        jnp.dot(lhs, w_fc1, preferred_element_type=jnp.float32), 0.0)   # lane 127 == 1.0
    h2 = jnp.maximum(
        jnp.dot(h1, w_fc2, preferred_element_type=jnp.float32), 0.0)    # lane 127 == 1.0
    logits = jnp.dot(h2, w_fc3, preferred_element_type=jnp.float32)

    # Numerically stable softmax over 128 lanes; padded lanes carry -1e9 -> exp == 0.
    m = jnp.max(logits, axis=-1, keepdims=True)
    e = jnp.exp(logits - m)
    out_ref[...] = e / jnp.sum(e, axis=-1, keepdims=True)


def init_params(key, board_size, conv_channels, h1, h2):
    H, W = board_size
    board_units = H * W
    nsp = (H - 1) * (W - 1)
    fc1_in = conv_channels * nsp + board_units
    ks = jax.random.split(key, 8)

    def u(k, shape, fan_in):
        b = 1.0 / jnp.sqrt(jnp.float32(fan_in))
        return jax.random.uniform(k, shape, jnp.float32, -b, b)

    return {
        "conv_w": u(ks[0], (conv_channels, 1, 2, 2), 4.0),
        "conv_b": u(ks[1], (conv_channels,), 4.0),
        "fc1_w": u(ks[2], (h1, fc1_in), fc1_in),
        "fc1_b": u(ks[3], (h1,), fc1_in),
        "fc2_w": u(ks[4], (h2, h1), h1),
        "fc2_b": u(ks[5], (h2,), h1),
        "fc3_w": u(ks[6], (board_units, h2), h2),
        "fc3_b": u(ks[7], (board_units,), h2),
    }


def pack_params(params, board_size):
    """One-time host-side packing into a single (640, 128) f32 weight stack."""
    H, W = board_size
    bu = H * W
    nsp = (H - 1) * (W - 1)
    C = params["conv_w"].shape[0]
    CN = C * nsp
    H1 = params["fc1_w"].shape[0]
    H2 = params["fc2_w"].shape[0]
    assert CN <= LANE and bu + 1 <= LANE and H1 <= LANE - 1 and H2 <= LANE - 1

    conv_w = np.asarray(params["conv_w"], np.float32)      # (C,1,2,2)
    conv_b = np.asarray(params["conv_b"], np.float32)
    fc1_w = np.asarray(params["fc1_w"], np.float32)
    fc1_b = np.asarray(params["fc1_b"], np.float32)
    fc2_w = np.asarray(params["fc2_w"], np.float32)
    fc2_b = np.asarray(params["fc2_b"], np.float32)
    fc3_w = np.asarray(params["fc3_w"], np.float32)
    fc3_b = np.asarray(params["fc3_b"], np.float32)

    pack = np.zeros((5 * LANE, LANE), np.float32)

    # --- Slab 0 (rows 0:128): 2x2 conv + bias as a matmul on the flat board row.
    #     Output lane c*nsp + s matches PyTorch's conv(...).view(-1) ordering.
    wc = pack[0:LANE]
    oi, oj = np.meshgrid(np.arange(H - 1), np.arange(W - 1), indexing="ij")
    s = (oi * (W - 1) + oj).reshape(-1)                    # (nsp,)
    for c in range(C):
        for di in range(2):
            for dj in range(2):
                p = ((oi + di) * W + (oj + dj)).reshape(-1)
                wc[p, c * nsp + s] = conv_w[c, 0, di, dj]
        wc[bu, c * nsp:(c + 1) * nsp] = conv_b[c]          # const-1 lane -> conv bias

    # --- Slab 1 (rows 128:384): fused K=256 fc1 over [relu(conv) | board, 1].
    w1 = pack[1 * LANE:3 * LANE]
    w1[0:CN, 0:H1] = fc1_w[:, :CN].T
    w1[LANE:LANE + bu, 0:H1] = fc1_w[:, CN:].T
    w1[LANE + bu, 0:H1] = fc1_b
    w1[LANE + bu, LANE - 1] = 1.0                          # propagate const-1 into h1

    # --- Slab 2 (rows 384:512): fc2 + bias.
    w2 = pack[3 * LANE:4 * LANE]
    w2[0:H1, 0:H2] = fc2_w.T
    w2[LANE - 1, 0:H2] = fc2_b
    w2[LANE - 1, LANE - 1] = 1.0                           # propagate const-1 into h2

    # --- Slab 3 (rows 512:640): fc3 + bias; padded logit lanes get -1e9.
    w3 = pack[4 * LANE:5 * LANE]
    w3[0:H2, 0:bu] = fc3_w.T
    w3[LANE - 1, 0:bu] = fc3_b
    w3[LANE - 1, bu:LANE] = _NEG

    return jnp.asarray(pack)


@functools.partial(jax.jit, static_argnames=("b_tile",))
def conv_connect_policy_forward_batched(xs, w_pack, *, b_tile=256):
    """Batched forward: xs is (B, H, W); returns (B, H*W) softmax rows."""
    B, H, W = xs.shape
    bu = H * W

    # Minimal host glue: flat board in lanes 0:bu, const-1 at lane bu, zeros after.
    xf = xs.reshape(B, bu).astype(jnp.float32)
    x_pack = jnp.concatenate(
        [xf, jnp.ones((B, 1), jnp.float32),
         jnp.zeros((B, LANE - bu - 1), jnp.float32)], axis=1)

    b_pad = pl.cdiv(B, b_tile) * b_tile
    if b_pad != B:
        x_pack = jnp.concatenate(
            [x_pack, jnp.zeros((b_pad - B, LANE), jnp.float32)], axis=0)

    out = pl.pallas_call(
        _policy_kernel,
        out_shape=jax.ShapeDtypeStruct((b_pad, LANE), jnp.float32),
        grid_spec=pltpu.PrefetchScalarGridSpec(
            num_scalar_prefetch=0,
            grid=(b_pad // b_tile,),
            in_specs=[
                pl.BlockSpec((b_tile, LANE), lambda b: (b, 0)),      # activations stream
                pl.BlockSpec((5 * LANE, LANE), lambda b: (0, 0)),    # weights VMEM-resident
            ],
            out_specs=pl.BlockSpec((b_tile, LANE), lambda b: (b, 0)),
        ),
        compiler_params=pltpu.CompilerParams(
            dimension_semantics=("parallel",)),
    )(x_pack, w_pack)
    return out[:B, :bu]


def conv_connect_policy_forward(x, w_pack):
    """Single-board forward matching ConvConnectPolicy.forward(x) semantics."""
    return conv_connect_policy_forward_batched(x[None], w_pack, b_tile=8)[0]


def reference_forward(x, params):
    """Pure-JAX replica of the PyTorch forward, for correctness checking."""
    H, W = x.shape
    w = params["conv_w"]  # (C,1,2,2)
    conv = (w[:, 0, 0, 0][:, None, None] * x[:H - 1, :W - 1]
            + w[:, 0, 0, 1][:, None, None] * x[:H - 1, 1:]
            + w[:, 0, 1, 0][:, None, None] * x[1:, :W - 1]
            + w[:, 0, 1, 1][:, None, None] * x[1:, 1:]
            + params["conv_b"][:, None, None])
    feat = jnp.concatenate([jnp.maximum(conv, 0.0).reshape(-1), x.reshape(-1)])
    h1 = jnp.maximum(feat @ params["fc1_w"].T + params["fc1_b"], 0.0)
    h2 = jnp.maximum(h1 @ params["fc2_w"].T + params["fc2_b"], 0.0)
    logp = h2 @ params["fc3_w"].T + params["fc3_b"]
    return jax.nn.softmax(logp)


if __name__ == "__main__":
    board_size = (6, 7)       # connect-four style board
    conv_channels = 4
    H1, H2 = 32, 32
    B = 512                   # batch of boards; grid of 2 steps at b_tile=256
    bu = board_size[0] * board_size[1]

    key = jax.random.PRNGKey(0)
    kp, kx = jax.random.split(key)
    params = init_params(kp, board_size, conv_channels, H1, H2)
    xs = jax.random.uniform(kx, (B,) + board_size, jnp.float32, -1.0, 1.0)

    w_pack = pack_params(params, board_size)

    probs = jax.block_until_ready(
        conv_connect_policy_forward_batched(xs, w_pack, b_tile=256))
    ref = jax.vmap(lambda x: reference_forward(x, params))(xs)

    assert probs.shape == (B, bu)
    assert jnp.allclose(jnp.sum(probs, axis=-1), 1.0, atol=1e-4)
    assert jnp.allclose(probs, ref, atol=1e-4, rtol=1e-4)

    # Single-board path (original module's forward signature).
    p1 = jax.block_until_ready(conv_connect_policy_forward(xs[0], w_pack))
    assert jnp.allclose(p1, ref[0], atol=1e-4, rtol=1e-4)

    # TODO(synk): select_action / finish_episode (Categorical sampling + REINFORCE
    # bookkeeping) are host-side RL plumbing, not part of the forward kernel.
    print("KERNEL_OK")
</pallas_src>

<mosaic_0001>
module attributes {stable_mosaic.version = 11 : i64} {
  func.func @_policy_kernel(%arg0: i32, %arg1: memref<256x128xf32, #tpu.memory_space<vmem>>, %arg2: memref<640x128xf32, #tpu.memory_space<vmem>>, %arg3: memref<256x128xf32, #tpu.memory_space<vmem>>) attributes {dimension_semantics = [#tpu.dimension_semantics<parallel>], iteration_bounds = array<i64: 2>, scalar_prefetch = 0 : i64, scratch_operands = 0 : i64, tpu.core_type = #tpu.core_type<tc>, window_params = [{transform_indices = @transform_0, window_bounds = array<i64: 256, 128>}, {pipeline_mode = #tpu.pipeline_mode<synchronous>, transform_indices = @transform_1, window_bounds = array<i64: 640, 128>}, {transform_indices = @transform_2, window_bounds = array<i64: 256, 128>}]} {
    %c0 = arith.constant 0 : index
    %c0_0 = arith.constant 0 : index
    %0 = vector.load %arg1[%c0, %c0_0] : memref<256x128xf32, #tpu.memory_space<vmem>>, vector<256x128xf32>
    %c0_1 = arith.constant 0 : index
    %c0_2 = arith.constant 0 : index
    %1 = vector.load %arg2[%c0_1, %c0_2] : memref<640x128xf32, #tpu.memory_space<vmem>>, vector<128x128xf32>
    %c128 = arith.constant 128 : index
    %c0_3 = arith.constant 0 : index
    %2 = vector.load %arg2[%c128, %c0_3] : memref<640x128xf32, #tpu.memory_space<vmem>>, vector<256x128xf32>
    %c384 = arith.constant 384 : index
    %c0_4 = arith.constant 0 : index
    %3 = vector.load %arg2[%c384, %c0_4] : memref<640x128xf32, #tpu.memory_space<vmem>>, vector<128x128xf32>
    %c512 = arith.constant 512 : index
    %c0_5 = arith.constant 0 : index
    %4 = vector.load %arg2[%c512, %c0_5] : memref<640x128xf32, #tpu.memory_space<vmem>>, vector<128x128xf32>
    %cst = arith.constant dense<0.000000e+00> : vector<256x128xf32>
    %5 = tpu.matmul %0, %1, %cst {dimension_numbers = #tpu.dot_dimension_numbers<[1], [0], [0], [1], [0, 0, 1, 1], [], []>} : vector<256x128xf32>, vector<128x128xf32>, vector<256x128xf32> -> vector<256x128xf32>
    %cst_6 = arith.constant 0.000000e+00 : f32
    %6 = vector.broadcast %cst_6 : f32 to vector<256x128xf32>
    %7 = arith.maximumf %5, %6 : vector<256x128xf32>
    %8 = tpu.concatenate %7, %0 in 1 : vector<256x128xf32>, vector<256x128xf32> -> vector<256x256xf32>
    %cst_7 = arith.constant dense<0.000000e+00> : vector<256x128xf32>
    %9 = tpu.matmul %8, %2, %cst_7 {dimension_numbers = #tpu.dot_dimension_numbers<[1], [0], [0], [1], [0, 0, 1, 1], [], []>} : vector<256x256xf32>, vector<256x128xf32>, vector<256x128xf32> -> vector<256x128xf32>
    %cst_8 = arith.constant 0.000000e+00 : f32
    %10 = vector.broadcast %cst_8 : f32 to vector<256x128xf32>
    %11 = arith.maximumf %9, %10 : vector<256x128xf32>
    %cst_9 = arith.constant dense<0.000000e+00> : vector<256x128xf32>
    %12 = tpu.matmul %11, %3, %cst_9 {dimension_numbers = #tpu.dot_dimension_numbers<[1], [0], [0], [1], [0, 0, 1, 1], [], []>} : vector<256x128xf32>, vector<128x128xf32>, vector<256x128xf32> -> vector<256x128xf32>
    %cst_10 = arith.constant 0.000000e+00 : f32
    %13 = vector.broadcast %cst_10 : f32 to vector<256x128xf32>
    %14 = arith.maximumf %12, %13 : vector<256x128xf32>
    %cst_11 = arith.constant dense<0.000000e+00> : vector<256x128xf32>
    %15 = tpu.matmul %14, %4, %cst_11 {dimension_numbers = #tpu.dot_dimension_numbers<[1], [0], [0], [1], [0, 0, 1, 1], [], []>} : vector<256x128xf32>, vector<128x128xf32>, vector<256x128xf32> -> vector<256x128xf32>
    %cst_12 = arith.constant dense<0xFF800000> : vector<256xf32>
    %16 = vector.multi_reduction <maximumf>, %15, %cst_12 [1] : vector<256x128xf32> to vector<256xf32>
    %17 = vector.shape_cast %16 : vector<256xf32> to vector<256x1xf32>
    %18 = vector.broadcast %17 : vector<256x1xf32> to vector<256x128xf32>
    %19 = arith.subf %15, %18 : vector<256x128xf32>
    %20 = math.exp %19 : vector<256x128xf32>
    %cst_13 = arith.constant dense<0.000000e+00> : vector<256xf32>
    %21 = vector.multi_reduction <add>, %20, %cst_13 [1] : vector<256x128xf32> to vector<256xf32>
    %22 = vector.shape_cast %21 : vector<256xf32> to vector<256x1xf32>
    %23 = vector.broadcast %22 : vector<256x1xf32> to vector<256x128xf32>
    %24 = arith.divf %20, %23 : vector<256x128xf32>
    %c0_14 = arith.constant 0 : index
    %c0_15 = arith.constant 0 : index
    %25 = vector.load %arg3[%c0_14, %c0_15] : memref<256x128xf32, #tpu.memory_space<vmem>>, vector<256x128xf32>
    tpu.vector_store %arg3[%c0_14, %c0_15], %24 {strides = array<i32>} : memref<256x128xf32, #tpu.memory_space<vmem>>, vector<256x128xf32>,
    return
  }
  func.func @transform_0(%arg0: i32) -> (i32, i32) {
    %c0_i32 = arith.constant 0 : i32
    %c0_i32_0 = arith.constant 0 : i32
    return %arg0, %c0_i32 : i32, i32
  }
  func.func @transform_1(%arg0: i32) -> (i32, i32) {
    %c0_i32 = arith.constant 0 : i32
    %c0_i32_0 = arith.constant 0 : i32
    %c0_i32_1 = arith.constant 0 : i32
    return %c0_i32, %c0_i32_0 : i32, i32
  }
  func.func @transform_2(%arg0: i32) -> (i32, i32) {
    %c0_i32 = arith.constant 0 : i32
    %c0_i32_0 = arith.constant 0 : i32
    return %arg0, %c0_i32 : i32, i32
  }
}

</mosaic_0001>

<llo_original>
// kernel: conv_connect_policy_forward_batched.1
$region0: #{conv_connect_policy_forward_batched.1}
  #allocation0 [shape = 'u32[]', space=smem, size = 0x4, offset = 0x4, fixed_abs, tag = 'smem constant byte address 0x4 - core index']
  #allocation1 [shape = 'u32[144,128]{1,0:T(1,128)}', space=vmem, size = 0x12000, scoped, tag = 'internal scratch']
  %s0 = inlined_call_operand.vmem [shape: f32[512,128], index: 0, kind: input, shape index: {}]
  %s1 = inlined_call_operand.vmem [shape: f32[640,128], index: 1, kind: input, shape index: {}]
  %s2 = inlined_call_operand.vmem [shape: f32[512,128], index: 2, kind: output, shape index: {}]
  %s3 = sld [smem:[#allocation0]]
  $region41: #{conv_connect_policy_forward_batched.1} parent=0
    _
  %s5 = ssub.s32 1, %s3
  %s6 = scalar_select 0, %s5, %s3
  loop: start=0, step=1, limit=4
  $region2: #{conv_connect_policy_forward_batched.1} parent=0 // loop_pre_header
    _
  $region3: #{conv_connect_policy_forward_batched.1} parent=0 // loop_header
    %s8 = sphi 0, %s12
    %p9 = scmp.ge.s32.totalorder %s8, 4
    %s18 = sphi 0, %s20
    %s21 = sphi 0, %s18
    %s22 = sphi 0, %s21
    %s38 = sphi 0, %s22
    %s42 = sphi 0, %s42
    %s44 = sphi 0, %s42
    %s45 = sphi 0, %s44
    %s59 = sphi 0, %s45
    %s65 = sphi 0, %s67
    %s68 = sphi 0, %s65
    %s69 = sphi 0, %s68
    %s85 = sphi 0, %s69
  $region4: #{conv_connect_policy_forward_batched.1} parent=0 // loop_header_branch
    %11 = sbr.rel (%p9) target = $region8
  $region5: #{conv_connect_policy_forward_batched.1} parent=0 // loop_body
    %s13 = ssub.s32 %s8, 1
    %s14 = ssub.s32 %s8, 2
    %s15 = sadd.s32 %s8, 1
    %s16 = ssub.s32 %s8, %s15
    %p17 = scmp.eq.s32.totalorder %s16, 0
    %s19 = sadd.s32 %s18, 1
    %s20 = scalar_select %p17, %s18, %s19
    %p23 = pneg %p17
    %p24 = scmp.eq.s32.totalorder %s8, 1
    %p25 = por %p23, %p24
    %p26 = scmp.ne.s32.totalorder %s18, %s21
    %p27 = scmp.eq.s32.totalorder %s8, 0
    %p28 = por %p26, %p27
    %p29 = scmp.ne.s32.totalorder %s18, %s21
    %p30 = scmp.eq.s32.totalorder %s13, 1
    %p31 = por %p29, %p30
    %p32 = scmp.ne.s32.totalorder %s21, %s22
    %p33 = scmp.eq.s32.totalorder %s13, 0
    %p34 = por %p32, %p33
    %p35 = scmp.ne.s32.totalorder %s21, %s22
    %p36 = scmp.eq.s32.totalorder %s14, 1
    %p37 = por %p35, %p36
    %p39 = scmp.ne.s32.totalorder %s22, %s38
    %p40 = scmp.eq.s32.totalorder %s14, 0
    %p41 = por %p39, %p40
    %s43 = sadd.s32 %s42, 1
    %p46 = scmp.eq.s32.totalorder %s8, 1
    %p47 = scmp.ne.s32.totalorder %s42, %s44
    %p48 = scmp.eq.s32.totalorder %s8, 0
    %p49 = por %p47, %p48
    %p50 = scmp.ne.s32.totalorder %s42, %s44
    %p51 = scmp.eq.s32.totalorder %s13, 1
    %p52 = por %p50, %p51
    %p53 = scmp.ne.s32.totalorder %s44, %s45
    %p54 = scmp.eq.s32.totalorder %s13, 0
    %p55 = por %p53, %p54
    %p56 = scmp.ne.s32.totalorder %s44, %s45
    %p57 = scmp.eq.s32.totalorder %s14, 1
    %p58 = por %p56, %p57
    %p60 = scmp.ne.s32.totalorder %s45, %s59
    %p61 = scmp.eq.s32.totalorder %s14, 0
    %p62 = por %p60, %p61
    %s63 = ssub.s32 %s8, %s15
    %p64 = scmp.eq.s32.totalorder %s63, 0
    %s66 = sadd.s32 %s65, 1
    %s67 = scalar_select %p64, %s65, %s66
    %p70 = pneg %p64
    %p71 = scmp.eq.s32.totalorder %s8, 1
    %p72 = por %p70, %p71
    %p73 = scmp.ne.s32.totalorder %s65, %s68
    %p74 = scmp.eq.s32.totalorder %s8, 0
    %p75 = por %p73, %p74
    %p76 = scmp.ne.s32.totalorder %s65, %s68
    %p77 = scmp.eq.s32.totalorder %s13, 1
    %p78 = por %p76, %p77
    %p79 = scmp.ne.s32.totalorder %s68, %s69
    %p80 = scmp.eq.s32.totalorder %s13, 0
    %p81 = por %p79, %p80
    %p82 = scmp.ne.s32.totalorder %s68, %s69
    %p83 = scmp.eq.s32.totalorder %s14, 1
    %p84 = por %p82, %p83
    %p86 = scmp.ne.s32.totalorder %s69, %s85
    %p87 = scmp.eq.s32.totalorder %s14, 0
    %p88 = por %p86, %p87
    %p89 = scmp.le.s32.totalorder 1, %s8
    %p90 = scmp.lt.s32.totalorder %s8, 3
    %p91 = pnand %p89, %p90
    %p92 = pneg %p91
    // Predicated region
    $region9: #{conv_connect_policy_forward_batched.1} parent=5 // pred_check
      _
    $region10: #{conv_connect_policy_forward_batched.1} parent=5 // pred_check_branch
      %94 = sbr.rel (%p91) target = $region12
    $region11: #{conv_connect_policy_forward_batched.1} parent=5 // pred_region
      %s95 = ssub.s32 %s8, 1
      // Predicated region
      $region13: #{conv_connect_policy_forward_batched.1} parent=11 // pred_check
        %p96 = pneg %p55
      $region14: #{conv_connect_policy_forward_batched.1} parent=11 // pred_check_branch
        %98 = sbr.rel (%p96) target = $region16
      $region15: #{conv_connect_policy_forward_batched.1} parent=11 // pred_region
        _
      $region16: #{conv_connect_policy_forward_batched.1} parent=11 // pred_fallthru
        _
    $region12: #{conv_connect_policy_forward_batched.1} parent=5 // pred_fallthru
      _
    %p99 = scmp.lt.s32.totalorder %s8, 2
    // Predicated region
    $region17: #{conv_connect_policy_forward_batched.1} parent=5 // pred_check
      %p100 = pneg %p99
    $region18: #{conv_connect_policy_forward_batched.1} parent=5 // pred_check_branch
      %102 = sbr.rel (%p100) target = $region20
    $region19: #{conv_connect_policy_forward_batched.1} parent=5 // pred_region
      // Predicated region
      $region21: #{conv_connect_policy_forward_batched.1} parent=19 // pred_check
        %p103 = pneg %p28
      $region22: #{conv_connect_policy_forward_batched.1} parent=19 // pred_check_branch
        %105 = sbr.rel (%p103) target = $region24
      $region23: #{conv_connect_policy_forward_batched.1} parent=19 // pred_region
        %s106 = smul.u32 32, %s8
        %p107 = scmp.lt.s32.totalorder %s106, 63
        %s108 = scalar_select %p107, %s106, 63
        %s109 = smul.addr %s108, 8
        %s110 = scalar_lea.vmem %s0, %s109
        %s111 = smul.u32 32, %s8
      $region24: #{conv_connect_policy_forward_batched.1} parent=19 // pred_fallthru
        _
    $region20: #{conv_connect_policy_forward_batched.1} parent=5 // pred_fallthru
      _
    %p112 = scmp.le.s32.totalorder 1, %s8
    %p113 = scmp.lt.s32.totalorder %s8, 3
    %p114 = pnand %p112, %p113
    %p115 = pneg %p114
    // Predicated region
    $region25: #{conv_connect_policy_forward_batched.1} parent=5 // pred_check
      _
    $region26: #{conv_connect_policy_forward_batched.1} parent=5 // pred_check_branch
      %117 = sbr.rel (%p114) target = $region28
    $region27: #{conv_connect_policy_forward_batched.1} parent=5 // pred_region
      %s118 = ssub.s32 %s8, 1
      %s119 = smul.u32 32, %s13
      %p120 = scmp.lt.s32.totalorder %s119, 63
      %s121 = scalar_select %p120, %s119, 63
      %s122 = smul.addr %s121, 8
      %s123 = scalar_lea.vmem %s0, %s122
      %p124 = pneg %p34
      %p125 = pneg %p31
      %p126 = pneg %p55
      %p127 = pneg %p52
      %p128 = pneg %p81
      %p129 = pneg %p78
      %s130 = smul.u32 32, %s13
      %p131 = scmp.lt.s32.totalorder %s130, 63
      %s132 = scalar_select %p131, %s130, 63
      %s133 = smul.addr %s132, 8
      %s134 = scalar_lea.vmem %s2, %s133
      %s135 = smul.u32 32, %s13
      %p136 = scmp.lt.s32.totalorder %s135, 63
      %s137 = scalar_select %p136, %s135, 63
      %s138 = smul.addr %s137, 8
      %s139 = scalar_lea.vmem %s0, %s138
      %s140 = smul.u32 32, %s13
      %s141 = smul.u32 32, %s13
      %p142 = scmp.lt.s32.totalorder %s141, 63
      %s143 = scalar_select %p142, %s141, 63
      %s144 = smul.addr %s143, 8
      %s145 = scalar_lea.vmem %s2, %s144
      %s146 = smul.u32 32, %s13
      %v147 = vld [vmem:[%s139] sm:$0xff]
      %v148 = vld [vmem:[%s139 + $0x8] sm:$0xff]
      %v149 = vld [vmem:[%s139 + $0x10] sm:$0xff]
      %v150 = vld [vmem:[%s139 + $0x18] sm:$0xff]
      %v151 = vld [vmem:[%s139 + $0x20] sm:$0xff]
      %v152 = vld [vmem:[%s139 + $0x28] sm:$0xff]
      %v153 = vld [vmem:[%s139 + $0x30] sm:$0xff]
      %v154 = vld [vmem:[%s139 + $0x38] sm:$0xff]
      %v155 = vld [vmem:[%s139 + $0x40] sm:$0xff]
      %v156 = vld [vmem:[%s139 + $0x48] sm:$0xff]
      %v157 = vld [vmem:[%s139 + $0x50] sm:$0xff]
      %v158 = vld [vmem:[%s139 + $0x58] sm:$0xff]
      %v159 = vld [vmem:[%s139 + $0x60] sm:$0xff]
      %v160 = vld [vmem:[%s139 + $0x68] sm:$0xff]
      %v161 = vld [vmem:[%s139 + $0x70] sm:$0xff]
      %v162 = vld [vmem:[%s139 + $0x78] sm:$0xff]
      %v163 = vld [vmem:[%s139 + $0x80] sm:$0xff]
      %v164 = vld [vmem:[%s139 + $0x88] sm:$0xff]
      %v165 = vld [vmem:[%s139 + $0x90] sm:$0xff]
      %v166 = vld [vmem:[%s139 + $0x98] sm:$0xff]
      %v167 = vld [vmem:[%s139 + $0xa0] sm:$0xff]
      %v168 = vld [vmem:[%s139 + $0xa8] sm:$0xff]
      %v169 = vld [vmem:[%s139 + $0xb0] sm:$0xff]
      %v170 = vld [vmem:[%s139 + $0xb8] sm:$0xff]
      %v171 = vld [vmem:[%s139 + $0xc0] sm:$0xff]
      %v172 = vld [vmem:[%s139 + $0xc8] sm:$0xff]
      %v173 = vld [vmem:[%s139 + $0xd0] sm:$0xff]
      %v174 = vld [vmem:[%s139 + $0xd8] sm:$0xff]
      %v175 = vld [vmem:[%s139 + $0xe0] sm:$0xff]
      %v176 = vld [vmem:[%s139 + $0xe8] sm:$0xff]
      %v177 = vld [vmem:[%s139 + $0xf0] sm:$0xff]
      %v178 = vld [vmem:[%s139 + $0xf8] sm:$0xff]
      %v179 = vld [vmem:[%s1] sm:$0xff]
      %v180 = vld [vmem:[%s1 + $0x8] sm:$0xff]
      %v181 = vld [vmem:[%s1 + $0x10] sm:$0xff]
      %v182 = vld [vmem:[%s1 + $0x18] sm:$0xff]
      %v183 = vld [vmem:[%s1 + $0x20] sm:$0xff]
      %v184 = vld [vmem:[%s1 + $0x28] sm:$0xff]
      %v185 = vld [vmem:[%s1 + $0x30] sm:$0xff]
      %v186 = vld [vmem:[%s1 + $0x38] sm:$0xff]
      %v187 = vld [vmem:[%s1 + $0x40] sm:$0xff]
      %v188 = vld [vmem:[%s1 + $0x48] sm:$0xff]
      %v189 = vld [vmem:[%s1 + $0x50] sm:$0xff]
      %v190 = vld [vmem:[%s1 + $0x58] sm:$0xff]
      %v191 = vld [vmem:[%s1 + $0x60] sm:$0xff]
      %v192 = vld [vmem:[%s1 + $0x68] sm:$0xff]
      %v193 = vld [vmem:[%s1 + $0x70] sm:$0xff]
      %v194 = vld [vmem:[%s1 + $0x78] sm:$0xff]
      %v195 = vld [vmem:[%s1 + $0x80] sm:$0xff]
      %v196 = vld [vmem:[%s1 + $0x88] sm:$0xff]
      %v197 = vld [vmem:[%s1 + $0x90] sm:$0xff]
      %v198 = vld [vmem:[%s1 + $0x98] sm:$0xff]
      %v199 = vld [vmem:[%s1 + $0xa0] sm:$0xff]
      %v200 = vld [vmem:[%s1 + $0xa8] sm:$0xff]
      %v201 = vld [vmem:[%s1 + $0xb0] sm:$0xff]
      %v202 = vld [vmem:[%s1 + $0xb8] sm:$0xff]
      %v203 = vld [vmem:[%s1 + $0xc0] sm:$0xff]
      %v204 = vld [vmem:[%s1 + $0xc8] sm:$0xff]
      %v205 = vld [vmem:[%s1 + $0xd0] sm:$0xff]
      %v206 = vld [vmem:[%s1 + $0xd8] sm:$0xff]
      %v207 = vld [vmem:[%s1 + $0xe0] sm:$0xff]
      %v208 = vld [vmem:[%s1 + $0xe8] sm:$0xff]
      %v209 = vld [vmem:[%s1 + $0xf0] sm:$0xff]
      %v210 = vld [vmem:[%s1 + $0xf8] sm:$0xff]
      %v211 = vld [vmem:[%s1 + $0x100] sm:$0xff]
      %v212 = vld [vmem:[%s1 + $0x108] sm:$0xff]
      %v213 = vld [vmem:[%s1 + $0x110] sm:$0xff]
      %v214 = vld [vmem:[%s1 + $0x118] sm:$0xff]
      %v215 = vld [vmem:[%s1 + $0x120] sm:$0xff]
      %v216 = vld [vmem:[%s1 + $0x128] sm:$0xff]
      %v217 = vld [vmem:[%s1 + $0x130] sm:$0xff]
      %v218 = vld [vmem:[%s1 + $0x138] sm:$0xff]
      %v219 = vld [vmem:[%s1 + $0x140] sm:$0xff]
      %v220 = vld [vmem:[%s1 + $0x148] sm:$0xff]
      %v221 = vld [vmem:[%s1 + $0x150] sm:$0xff]
      %v222 = vld [vmem:[%s1 + $0x158] sm:$0xff]
      %v223 = vld [vmem:[%s1 + $0x160] sm:$0xff]
      %v224 = vld [vmem:[%s1 + $0x168] sm:$0xff]
      %v225 = vld [vmem:[%s1 + $0x170] sm:$0xff]
      %v226 = vld [vmem:[%s1 + $0x178] sm:$0xff]
      %v227 = vld [vmem:[%s1 + $0x180] sm:$0xff]
      %v228 = vld [vmem:[%s1 + $0x188] sm:$0xff]
      %v229 = vld [vmem:[%s1 + $0x190] sm:$0xff]
      %v230 = vld [vmem:[%s1 + $0x198] sm:$0xff]
      %v231 = vld [vmem:[%s1 + $0x1a0] sm:$0xff]
      %v232 = vld [vmem:[%s1 + $0x1a8] sm:$0xff]
      %v233 = vld [vmem:[%s1 + $0x1b0] sm:$0xff]
      %v234 = vld [vmem:[%s1 + $0x1b8] sm:$0xff]
      %v235 = vld [vmem:[%s1 + $0x1c0] sm:$0xff]
      %v236 = vld [vmem:[%s1 + $0x1c8] sm:$0xff]
      %v237 = vld [vmem:[%s1 + $0x1d0] sm:$0xff]
      %v238 = vld [vmem:[%s1 + $0x1d8] sm:$0xff]
      %v239 = vld [vmem:[%s1 + $0x1e0] sm:$0xff]
      %v240 = vld [vmem:[%s1 + $0x1e8] sm:$0xff]
      %v241 = vld [vmem:[%s1 + $0x1f0] sm:$0xff]
      %v242 = vld [vmem:[%s1 + $0x1f8] sm:$0xff]
      %v243 = vld [vmem:[%s1 + $0x200] sm:$0xff]
      %v244 = vld [vmem:[%s1 + $0x208] sm:$0xff]
      %v245 = vld [vmem:[%s1 + $0x210] sm:$0xff]
      %v246 = vld [vmem:[%s1 + $0x218] sm:$0xff]
      %v247 = vld [vmem:[%s1 + $0x220] sm:$0xff]
      %v248 = vld [vmem:[%s1 + $0x228] sm:$0xff]
      %v249 = vld [vmem:[%s1 + $0x230] sm:$0xff]
      %v250 = vld [vmem:[%s1 + $0x238] sm:$0xff]
      %v251 = vld [vmem:[%s1 + $0x240] sm:$0xff]
      %v252 = vld [vmem:[%s1 + $0x248] sm:$0xff]
      %v253 = vld [vmem:[%s1 + $0x250] sm:$0xff]
      %v254 = vld [vmem:[%s1 + $0x258] sm:$0xff]
      %v255 = vld [vmem:[%s1 + $0x260] sm:$0xff]
      %v256 = vld [vmem:[%s1 + $0x268] sm:$0xff]
      %v257 = vld [vmem:[%s1 + $0x270] sm:$0xff]
      %v258 = vld [vmem:[%s1 + $0x278] sm:$0xff]
      %259 = vmatprep.subr.mxu0 0.0
      %260 = vmatpush1.msra.mxu0 %v179
      %261 = vmatprep.subr.mxu0 0.0
      %262 = vmatpush1.msra.mxu0 %v180
      %263 = vmatprep.subr.mxu0 0.0
      %264 = vmatpush1.msra.mxu0 %v181
      %265 = vmatprep.subr.mxu0 0.0
      %266 = vmatpush1.msra.mxu0 %v182
      %267 = vmatprep.subr.mxu0 0.0
      %268 = vmatpush1.msra.mxu0 %v183
      %269 = vmatprep.subr.mxu0 0.0
      %270 = vmatpush1.msra.mxu0 %v184
      %271 = vmatprep.subr.mxu0 0.0
      %272 = vmatpush1.msra.mxu0 %v185
      %273 = vmatprep.subr.mxu0 0.0
      %274 = vmatpush1.msra.mxu0 %v186
      %275 = vmatprep.subr.mxu0 0.0
      %276 = vmatpush1.msra.mxu0 %v187
      %277 = vmatprep.subr.mxu0 0.0
      %278 = vmatpush1.msra.mxu0 %v188
      %279 = vmatprep.subr.mxu0 0.0
      %280 = vmatpush1.msra.mxu0 %v189
      %281 = vmatprep.subr.mxu0 0.0
      %282 = vmatpush1.msra.mxu0 %v190
      %283 = vmatprep.subr.mxu0 0.0
      %284 = vmatpush1.msra.mxu0 %v191
      %285 = vmatprep.subr.mxu0 0.0
      %286 = vmatpush1.msra.mxu0 %v192
      %287 = vmatprep.subr.mxu0 0.0
      %288 = vmatpush1.msra.mxu0 %v193
      %289 = vmatprep.subr.mxu0 0.0
      %290 = vmatpush1.msra.mxu0 %v194
      %291 = vmatprep.subr.mxu0 0.0
      %292 = vmatpush1.msra.mxu0 0.0
      %293 = vmatprep.subr.mxu0 0.0
      %294 = vmatpush1.msra.mxu0 0.0
      %295 = vmatprep.subr.mxu0 0.0
      %296 = vmatpush1.msra.mxu0 0.0
      %297 = vmatprep.subr.mxu0 0.0
      %298 = vmatpush1.msra.mxu0 0.0
      %299 = vmatprep.subr.mxu0 0.0
      %300 = vmatpush1.msra.mxu0 0.0
      %301 = vmatprep.subr.mxu0 0.0
      %302 = vmatpush1.msra.mxu0 0.0
      %303 = vmatprep.subr.mxu0 0.0
      %304 = vmatpush1.msra.mxu0 0.0
      %305 = vmatprep.subr.mxu0 0.0
      %306 = vmatpush1.msra.mxu0 0.0
      %307 = vmatprep.subr.mxu0 0.0
      %308 = vmatpush1.msra.mxu0 0.0
      %309 = vmatprep.subr.mxu0 0.0
      %310 = vmatpush1.msra.mxu0 0.0
      %311 = vmatprep.subr.mxu0 0.0
      %312 = vmatpush1.msra.mxu0 0.0
      %313 = vmatprep.subr.mxu0 0.0
      %314 = vmatpush1.msra.mxu0 0.0
      %315 = vmatprep.subr.mxu0 0.0
      %316 = vmatpush1.msra.mxu0 0.0
      %317 = vmatprep.subr.mxu0 0.0
      %318 = vmatpush1.msra.mxu0 0.0
      %319 = vmatprep.subr.mxu0 0.0
      %320 = vmatpush1.msra.mxu0 0.0
      %321 = vmatprep.subr.mxu0 0.0
      %322 = vmatpush1.msra.mxu0 0.0
      %323 = vmatprep.mubr.f32.mxu0 0.0
      %324 = vmatmul.mubr.f32.gmra.mrb[0].mxu0 %v147
      %v325 = vpop.f32.mrb[0].mxu0
      %v326 = vadd.f32 0.0, %v325
      %v327 = vpop.f32.mrb[0].mxu0
      %328 = vmatprep.mubr.f32.mxu0 0.0
      %329 = vmatmul.mubr.f32.gmra.mrb[0].mxu0 %v148
      %v330 = vpop.f32.mrb[0].mxu0
      %v331 = vadd.f32 0.0, %v330
      %v332 = vpop.f32.mrb[0].mxu0
      %333 = vmatprep.mubr.f32.mxu0 0.0
      %334 = vmatmul.mubr.f32.gmra.mrb[0].mxu0 %v149
      %v335 = vpop.f32.mrb[0].mxu0
      %v336 = vadd.f32 0.0, %v335
      %v337 = vpop.f32.mrb[0].mxu0
      %338 = vmatprep.mubr.f32.mxu0 0.0
      %339 = vmatmul.mubr.f32.gmra.mrb[0].mxu0 %v150
      %v340 = vpop.f32.mrb[0].mxu0
      %v341 = vadd.f32 0.0, %v340
      %v342 = vpop.f32.mrb[0].mxu0
      %343 = vmatprep.mubr.f32.mxu0 0.0
      %344 = vmatmul.mubr.f32.gmra.mrb[0].mxu0 %v151
      %v345 = vpop.f32.mrb[0].mxu0
      %v346 = vadd.f32 0.0, %v345
      %v347 = vpop.f32.mrb[0].mxu0
      %348 = vmatprep.mubr.f32.mxu0 0.0
      %349 = vmatmul.mubr.f32.gmra.mrb[0].mxu0 %v152
      %v350 = vpop.f32.mrb[0].mxu0
      %v351 = vadd.f32 0.0, %v350
      %v352 = vpop.f32.mrb[0].mxu0
      %353 = vmatprep.mubr.f32.mxu0 0.0
      %354 = vmatmul.mubr.f32.gmra.mrb[0].mxu0 %v153
      %v355 = vpop.f32.mrb[0].mxu0
      %v356 = vadd.f32 0.0, %v355
      %v357 = vpop.f32.mrb[0].mxu0
      %358 = vmatprep.mubr.f32.mxu0 0.0
      %359 = vmatmul.mubr.f32.gmra.mrb[0].mxu0 %v154
      %v360 = vpop.f32.mrb[0].mxu0
      %v361 = vadd.f32 0.0, %v360
      %v362 = vpop.f32.mrb[0].mxu0
      %363 = vmatprep.mubr.f32.mxu0 0.0
      %364 = vmatmul.mubr.f32.gmra.mrb[0].mxu0 %v155
      %v365 = vpop.f32.mrb[0].mxu0
      %v366 = vadd.f32 0.0, %v365
      %v367 = vpop.f32.mrb[0].mxu0
      %368 = vmatprep.mubr.f32.mxu0 0.0
      %369 = vmatmul.mubr.f32.gmra.mrb[0].mxu0 %v156
      %v370 = vpop.f32.mrb[0].mxu0
      %v371 = vadd.f32 0.0, %v370
      %v372 = vpop.f32.mrb[0].mxu0
      %373 = vmatprep.mubr.f32.mxu0 0.0
      %374 = vmatmul.mubr.f32.gmra.mrb[0].mxu0 %v157
      %v375 = vpop.f32.mrb[0].mxu0
      %v376 = vadd.f32 0.0, %v375
      %v377 = vpop.f32.mrb[0].mxu0
      %378 = vmatprep.mubr.f32.mxu0 0.0
      %379 = vmatmul.mubr.f32.gmra.mrb[0].mxu0 %v158
      %v380 = vpop.f32.mrb[0].mxu0
      %v381 = vadd.f32 0.0, %v380
      %v382 = vpop.f32.mrb[0].mxu0
      %383 = vmatprep.mubr.f32.mxu0 0.0
      %384 = vmatmul.mubr.f32.gmra.mrb[0].mxu0 %v159
      %v385 = vpop.f32.mrb[0].mxu0
      %v386 = vadd.f32 0.0, %v385
      %v387 = vpop.f32.mrb[0].mxu0
      %388 = vmatprep.mubr.f32.mxu0 0.0
      %389 = vmatmul.mubr.f32.gmra.mrb[0].mxu0 %v160
      %v390 = vpop.f32.mrb[0].mxu0
      %v391 = vadd.f32 0.0, %v390
      %v392 = vpop.f32.mrb[0].mxu0
      %393 = vmatprep.mubr.f32.mxu0 0.0
      %394 = vmatmul.mubr.f32.gmra.mrb[0].mxu0 %v161
      %v395 = vpop.f32.mrb[0].mxu0
      %v396 = vadd.f32 0.0, %v395
      %v397 = vpop.f32.mrb[0].mxu0
      %398 = vmatprep.mubr.f32.mxu0 0.0
      %399 = vmatmul.mubr.f32.gmra.mrb[0].mxu0 %v162
      %v400 = vpop.f32.mrb[0].mxu0
      %v401 = vadd.f32 0.0, %v400
      %v402 = vpop.f32.mrb[0].mxu0
      %403 = vmatprep.mubr.f32.mxu0 0.0
      %404 = vmatmul.mubr.f32.gmra.mrb[0].mxu0 %v163
      %v405 = vpop.f32.mrb[0].mxu0
      %v406 = vadd.f32 0.0, %v405
      %v407 = vpop.f32.mrb[0].mxu0
      %408 = vmatprep.mubr.f32.mxu0 0.0
      %409 = vmatmul.mubr.f32.gmra.mrb[0].mxu0 %v164
      %v410 = vpop.f32.mrb[0].mxu0
      %v411 = vadd.f32 0.0, %v410
      %v412 = vpop.f32.mrb[0].mxu0
      %413 = vmatprep.mubr.f32.mxu0 0.0
      %414 = vmatmul.mubr.f32.gmra.mrb[0].mxu0 %v165
      %v415 = vpop.f32.mrb[0].mxu0
      %v416 = vadd.f32 0.0, %v415
      %v417 = vpop.f32.mrb[0].mxu0
      %418 = vmatprep.mubr.f32.mxu0 0.0
      %419 = vmatmul.mubr.f32.gmra.mrb[0].mxu0 %v166
      %v420 = vpop.f32.mrb[0].mxu0
      %v421 = vadd.f32 0.0, %v420
      %v422 = vpop.f32.mrb[0].mxu0
      %423 = vmatprep.mubr.f32.mxu0 0.0
      %424 = vmatmul.mubr.f32.gmra.mrb[0].mxu0 %v167
      %v425 = vpop.f32.mrb[0].mxu0
      %v426 = vadd.f32 0.0, %v425
      %v427 = vpop.f32.mrb[0].mxu0
      %428 = vmatprep.mubr.f32.mxu0 0.0
      %429 = vmatmul.mubr.f32.gmra.mrb[0].mxu0 %v168
      %v430 = vpop.f32.mrb[0].mxu0
      %v431 = vadd.f32 0.0, %v430
      %v432 = vpop.f32.mrb[0].mxu0
      %433 = vmatprep.mubr.f32.mxu0 0.0
      %434 = vmatmul.mubr.f32.gmra.mrb[0].mxu0 %v169
      %v435 = vpop.f32.mrb[0].mxu0
      %v436 = vadd.f32 0.0, %v435
      %v437 = vpop.f32.mrb[0].mxu0
      %438 = vmatprep.mubr.f32.mxu0 0.0
      %439 = vmatmul.mubr.f32.gmra.mrb[0].mxu0 %v170
      %v440 = vpop.f32.mrb[0].mxu0
      %v441 = vadd.f32 0.0, %v440
      %v442 = vpop.f32.mrb[0].mxu0
      %443 = vmatprep.mubr.f32.mxu0 0.0
      %444 = vmatmul.mubr.f32.gmra.mrb[0].mxu0 %v171
      %v445 = vpop.f32.mrb[0].mxu0
      %v446 = vadd.f32 0.0, %v445
      %v447 = vpop.f32.mrb[0].mxu0
      %448 = vmatprep.mubr.f32.mxu0 0.0
      %449 = vmatmul.mubr.f32.gmra.mrb[0].mxu0 %v172
      %v450 = vpop.f32.mrb[0].mxu0
      %v451 = vadd.f32 0.0, %v450
      %v452 = vpop.f32.mrb[0].mxu0
      %453 = vmatprep.mubr.f32.mxu0 0.0
      %454 = vmatmul.mubr.f32.gmra.mrb[0].mxu0 %v173
      %v455 = vpop.f32.mrb[0].mxu0
      %v456 = vadd.f32 0.0, %v455
      %v457 = vpop.f32.mrb[0].mxu0
      %458 = vmatprep.mubr.f32.mxu0 0.0
      %459 = vmatmul.mubr.f32.gmra.mrb[0].mxu0 %v174
      %v460 = vpop.f32.mrb[0].mxu0
      %v461 = vadd.f32 0.0, %v460
      %v462 = vpop.f32.mrb[0].mxu0
      %463 = vmatprep.mubr.f32.mxu0 0.0
      %464 = vmatmul.mubr.f32.gmra.mrb[0].mxu0 %v175
      %v465 = vpop.f32.mrb[0].mxu0
      %v466 = vadd.f32 0.0, %v465
      %v467 = vpop.f32.mrb[0].mxu0
      %468 = vmatprep.mubr.f32.mxu0 0.0
      %469 = vmatmul.mubr.f32.gmra.mrb[0].mxu0 %v176
      %v470 = vpop.f32.mrb[0].mxu0
      %v471 = vadd.f32 0.0, %v470
      %v472 = vpop.f32.mrb[0].mxu0
      %473 = vmatprep.mubr.f32.mxu0 0.0
      %474 = vmatmul.mubr.f32.gmra.mrb[0].mxu0 %v177
      %v475 = vpop.f32.mrb[0].mxu0
      %v476 = vadd.f32 0.0, %v475
      %v477 = vpop.f32.mrb[0].mxu0
      %478 = vmatprep.mubr.f32.mxu0 0.0
      %479 = vmatmul.mubr.f32.gmra.mrb[0].mxu0 %v178
      %v480 = vpop.f32.mrb[0].mxu0
      %v481 = vadd.f32 0.0, %v480
      %v482 = vpop.f32.mrb[0].mxu0
      %483 = vdwg.mxu0
      %v484 = vmax.f32 %v326, 0.0
      %v485 = vmax.f32 %v331, 0.0
      %v486 = vmax.f32 %v336, 0.0
      %v487 = vmax.f32 %v341, 0.0
      %v488 = vmax.f32 %v346, 0.0
      %v489 = vmax.f32 %v351, 0.0
      %v490 = vmax.f32 %v356, 0.0
      %v491 = vmax.f32 %v361, 0.0
      %v492 = vmax.f32 %v366, 0.0
      %v493 = vmax.f32 %v371, 0.0
      %v494 = vmax.f32 %v376, 0.0
      %v495 = vmax.f32 %v381, 0.0
      %v496 = vmax.f32 %v386, 0.0
      %v497 = vmax.f32 %v391, 0.0
      %v498 = vmax.f32 %v396, 0.0
      %v499 = vmax.f32 %v401, 0.0
      %v500 = vmax.f32 %v406, 0.0
      %v501 = vmax.f32 %v411, 0.0
      %v502 = vmax.f32 %v416, 0.0
      %v503 = vmax.f32 %v421, 0.0
      %v504 = vmax.f32 %v426, 0.0
      %v505 = vmax.f32 %v431, 0.0
      %v506 = vmax.f32 %v436, 0.0
      %v507 = vmax.f32 %v441, 0.0
      %v508 = vmax.f32 %v446, 0.0
      %v509 = vmax.f32 %v451, 0.0
      %v510 = vmax.f32 %v456, 0.0
      %v511 = vmax.f32 %v461, 0.0
      %v512 = vmax.f32 %v466, 0.0
      %v513 = vmax.f32 %v471, 0.0
      %v514 = vmax.f32 %v476, 0.0
      %v515 = vmax.f32 %v481, 0.0
      %516 = vmatprep.subr.mxu0 0.0
      %517 = vmatpush1.msra.mxu0 %v195
      %518 = vmatprep.subr.mxu0 0.0
      %519 = vmatpush1.msra.mxu0 %v196
      %520 = vmatprep.subr.mxu0 0.0
      %521 = vmatpush1.msra.mxu0 %v197
      %522 = vmatprep.subr.mxu0 0.0
      %523 = vmatpush1.msra.mxu0 %v198
      %524 = vmatprep.subr.mxu0 0.0
      %525 = vmatpush1.msra.mxu0 %v199
      %526 = vmatprep.subr.mxu0 0.0
      %527 = vmatpush1.msra.mxu0 %v200
      %528 = vmatprep.subr.mxu0 0.0
      %529 = vmatpush1.msra.mxu0 %v201
      %530 = vmatprep.subr.mxu0 0.0
      %531 = vmatpush1.msra.mxu0 %v202
      %532 = vmatprep.subr.mxu0 0.0
      %533 = vmatpush1.msra.mxu0 %v203
      %534 = vmatprep.subr.mxu0 0.0
      %535 = vmatpush1.msra.mxu0 %v204
      %536 = vmatprep.subr.mxu0 0.0
      %537 = vmatpush1.msra.mxu0 %v205
      %538 = vmatprep.subr.mxu0 0.0
      %539 = vmatpush1.msra.mxu0 %v206
      %540 = vmatprep.subr.mxu0 0.0
      %541 = vmatpush1.msra.mxu0 %v207
      %542 = vmatprep.subr.mxu0 0.0
      %543 = vmatpush1.msra.mxu0 %v208
      %544 = vmatprep.subr.mxu0 0.0
      %545 = vmatpush1.msra.mxu0 %v209
      %546 = vmatprep.subr.mxu0 0.0
      %547 = vmatpush1.msra.mxu0 %v210
      %548 = vmatprep.subr.mxu0 0.0
      %549 = vmatpush1.msra.mxu0 %v211
      %550 = vmatprep.subr.mxu0 0.0
      %551 = vmatpush1.msra.mxu0 %v212
      %552 = vmatprep.subr.mxu0 0.0
      %553 = vmatpush1.msra.mxu0 %v213
      %554 = vmatprep.subr.mxu0 0.0
      %555 = vmatpush1.msra.mxu0 %v214
      %556 = vmatprep.subr.mxu0 0.0
      %557 = vmatpush1.msra.mxu0 %v215
      %558 = vmatprep.subr.mxu0 0.0
      %559 = vmatpush1.msra.mxu0 %v216
      %560 = vmatprep.subr.mxu0 0.0
      %561 = vmatpush1.msra.mxu0 %v217
      %562 = vmatprep.subr.mxu0 0.0
      %563 = vmatpush1.msra.mxu0 %v218
      %564 = vmatprep.subr.mxu0 0.0
      %565 = vmatpush1.msra.mxu0 %v219
      %566 = vmatprep.subr.mxu0 0.0
      %567 = vmatpush1.msra.mxu0 %v220
      %568 = vmatprep.subr.mxu0 0.0
      %569 = vmatpush1.msra.mxu0 %v221
      %570 = vmatprep.subr.mxu0 0.0
      %571 = vmatpush1.msra.mxu0 %v222
      %572 = vmatprep.subr.mxu0 0.0
      %573 = vmatpush1.msra.mxu0 %v223
      %574 = vmatprep.subr.mxu0 0.0
      %575 = vmatpush1.msra.mxu0 %v224
      %576 = vmatprep.subr.mxu0 0.0
      %577 = vmatpush1.msra.mxu0 %v225
      %578 = vmatprep.subr.mxu0 0.0
      %579 = vmatpush1.msra.mxu0 %v226
      %580 = vmatprep.mubr.f32.mxu0 %v147
      %581 = vmatmul.mubr.f32.gmra.mrb[0].mxu0 %v484
      %v582 = vpop.f32.mrb[0].mxu0
      %v583 = vadd.f32 0.0, %v582
      %v584 = vpop.f32.mrb[0].mxu0
      %585 = vmatprep.mubr.f32.mxu0 %v148
      %586 = vmatmul.mubr.f32.gmra.mrb[0].mxu0 %v485
      %v587 = vpop.f32.mrb[0].mxu0
      %v588 = vadd.f32 0.0, %v587
      %v589 = vpop.f32.mrb[0].mxu0
      %590 = vmatprep.mubr.f32.mxu0 %v149
      %591 = vmatmul.mubr.f32.gmra.mrb[0].mxu0 %v486
      %v592 = vpop.f32.mrb[0].mxu0
      %v593 = vadd.f32 0.0, %v592
      %v594 = vpop.f32.mrb[0].mxu0
      %595 = vmatprep.mubr.f32.mxu0 %v150
      %596 = vmatmul.mubr.f32.gmra.mrb[0].mxu0 %v487
      %v597 = vpop.f32.mrb[0].mxu0
      %v598 = vadd.f32 0.0, %v597
      %v599 = vpop.f32.mrb[0].mxu0
      %600 = vmatprep.mubr.f32.mxu0 %v151
      %601 = vmatmul.mubr.f32.gmra.mrb[0].mxu0 %v488
      %v602 = vpop.f32.mrb[0].mxu0
      %v603 = vadd.f32 0.0, %v602
      %v604 = vpop.f32.mrb[0].mxu0
      %605 = vmatprep.mubr.f32.mxu0 %v152
      %606 = vmatmul.mubr.f32.gmra.mrb[0].mxu0 %v489
      %v607 = vpop.f32.mrb[0].mxu0
      %v608 = vadd.f32 0.0, %v607
      %v609 = vpop.f32.mrb[0].mxu0
      %610 = vmatprep.mubr.f32.mxu0 %v153
      %611 = vmatmul.mubr.f32.gmra.mrb[0].mxu0 %v490
      %v612 = vpop.f32.mrb[0].mxu0
      %v613 = vadd.f32 0.0, %v612
      %v614 = vpop.f32.mrb[0].mxu0
      %615 = vmatprep.mubr.f32.mxu0 %v154
      %616 = vmatmul.mubr.f32.gmra.mrb[0].mxu0 %v491
      %v617 = vpop.f32.mrb[0].mxu0
      %v618 = vadd.f32 0.0, %v617
      %v619 = vpop.f32.mrb[0].mxu0
      %620 = vmatprep.mubr.f32.mxu0 %v155
      %621 = vmatmul.mubr.f32.gmra.mrb[0].mxu0 %v492
      %v622 = vpop.f32.mrb[0].mxu0
      %v623 = vadd.f32 0.0, %v622
      %v624 = vpop.f32.mrb[0].mxu0
      %625 = vmatprep.mubr.f32.mxu0 %v156
      %626 = vmatmul.mubr.f32.gmra.mrb[0].mxu0 %v493
      %v627 = vpop.f32.mrb[0].mxu0
      %v628 = vadd.f32 0.0, %v627
      %v629 = vpop.f32.mrb[0].mxu0
      %630 = vmatprep.mubr.f32.mxu0 %v157
      %631 = vmatmul.mubr.f32.gmra.mrb[0].mxu0 %v494
      %v632 = vpop.f32.mrb[0].mxu0
      %v633 = vadd.f32 0.0, %v632
      %v634 = vpop.f32.mrb[0].mxu0
      %635 = vmatprep.mubr.f32.mxu0 %v158
      %636 = vmatmul.mubr.f32.gmra.mrb[0].mxu0 %v495
      %v637 = vpop.f32.mrb[0].mxu0
      %v638 = vadd.f32 0.0, %v637
      %v639 = vpop.f32.mrb[0].mxu0
      %640 = vmatprep.mubr.f32.mxu0 %v159
      %641 = vmatmul.mubr.f32.gmra.mrb[0].mxu0 %v496
      %v642 = vpop.f32.mrb[0].mxu0
      %v643 = vadd.f32 0.0, %v642
      %v644 = vpop.f32.mrb[0].mxu0
      %645 = vmatprep.mubr.f32.mxu0 %v160
      %646 = vmatmul.mubr.f32.gmra.mrb[0].mxu0 %v497
      %v647 = vpop.f32.mrb[0].mxu0
      %v648 = vadd.f32 0.0, %v647
      %v649 = vpop.f32.mrb[0].mxu0
      %650 = vmatprep.mubr.f32.mxu0 %v161
      %651 = vmatmul.mubr.f32.gmra.mrb[0].mxu0 %v498
      %v652 = vpop.f32.mrb[0].mxu0
      %v653 = vadd.f32 0.0, %v652
      %v654 = vpop.f32.mrb[0].mxu0
      %655 = vmatprep.mubr.f32.mxu0 %v162
      %656 = vmatmul.mubr.f32.gmra.mrb[0].mxu0 %v499
      %v657 = vpop.f32.mrb[0].mxu0
      %v658 = vadd.f32 0.0, %v657
      %v659 = vpop.f32.mrb[0].mxu0
      %660 = vmatprep.mubr.f32.mxu0 %v163
      %661 = vmatmul.mubr.f32.gmra.mrb[0].mxu0 %v500
      %v662 = vpop.f32.mrb[0].mxu0
      %v663 = vadd.f32 0.0, %v662
      %v664 = vpop.f32.mrb[0].mxu0
      %665 = vmatprep.mubr.f32.mxu0 %v164
      %666 = vmatmul.mubr.f32.gmra.mrb[0].mxu0 %v501
      %v667 = vpop.f32.mrb[0].mxu0
      %v668 = vadd.f32 0.0, %v667
      %v669 = vpop.f32.mrb[0].mxu0
      %670 = vmatprep.mubr.f32.mxu0 %v165
      %671 = vmatmul.mubr.f32.gmra.mrb[0].mxu0 %v502
      %v672 = vpop.f32.mrb[0].mxu0
      %v673 = vadd.f32 0.0, %v672
      %v674 = vpop.f32.mrb[0].mxu0
      %675 = vmatprep.mubr.f32.mxu0 %v166
      %676 = vmatmul.mubr.f32.gmra.mrb[0].mxu0 %v503
      %v677 = vpop.f32.mrb[0].mxu0
      %v678 = vadd.f32 0.0, %v677
      %v679 = vpop.f32.mrb[0].mxu0
      %680 = vmatprep.mubr.f32.mxu0 %v167
      %681 = vmatmul.mubr.f32.gmra.mrb[0].mxu0 %v504
      %v682 = vpop.f32.mrb[0].mxu0
      %v683 = vadd.f32 0.0, %v682
      %v684 = vpop.f32.mrb[0].mxu0
      %685 = vmatprep.mubr.f32.mxu0 %v168
      %686 = vmatmul.mubr.f32.gmra.mrb[0].mxu0 %v505
      %v687 = vpop.f32.mrb[0].mxu0
      %v688 = vadd.f32 0.0, %v687
      %v689 = vpop.f32.mrb[0].mxu0
      %690 = vmatprep.mubr.f32.mxu0 %v169
      %691 = vmatmul.mubr.f32.gmra.mrb[0].mxu0 %v506
      %v692 = vpop.f32.mrb[0].mxu0
      %v693 = vadd.f32 0.0, %v692
      %v694 = vpop.f32.mrb[0].mxu0
      %695 = vmatprep.mubr.f32.mxu0 %v170
      %696 = vmatmul.mubr.f32.gmra.mrb[0].mxu0 %v507
      %v697 = vpop.f32.mrb[0].mxu0
      %v698 = vadd.f32 0.0, %v697
      %v699 = vpop.f32.mrb[0].mxu0
      %700 = vmatprep.mubr.f32.mxu0 %v171
      %701 = vmatmul.mubr.f32.gmra.mrb[0].mxu0 %v508
      %v702 = vpop.f32.mrb[0].mxu0
      %v703 = vadd.f32 0.0, %v702
      %v704 = vpop.f32.mrb[0].mxu0
      %705 = vmatprep.mubr.f32.mxu0 %v172
      %706 = vmatmul.mubr.f32.gmra.mrb[0].mxu0 %v509
      %v707 = vpop.f32.mrb[0].mxu0
      %v708 = vadd.f32 0.0, %v707
      %v709 = vpop.f32.mrb[0].mxu0
      %710 = vmatprep.mubr.f32.mxu0 %v173
      %711 = vmatmul.mubr.f32.gmra.mrb[0].mxu0 %v510
      %v712 = vpop.f32.mrb[0].mxu0
      %v713 = vadd.f32 0.0, %v712
      %v714 = vpop.f32.mrb[0].mxu0
      %715 = vmatprep.mubr.f32.mxu0 %v174
      %716 = vmatmul.mubr.f32.gmra.mrb[0].mxu0 %v511
      %v717 = vpop.f32.mrb[0].mxu0
      %v718 = vadd.f32 0.0, %v717
      %v719 = vpop.f32.mrb[0].mxu0
      %720 = vmatprep.mubr.f32.mxu0 %v175
      %721 = vmatmul.mubr.f32.gmra.mrb[0].mxu0 %v512
      %v722 = vpop.f32.mrb[0].mxu0
      %v723 = vadd.f32 0.0, %v722
      %v724 = vpop.f32.mrb[0].mxu0
      %725 = vmatprep.mubr.f32.mxu0 %v176
      %726 = vmatmul.mubr.f32.gmra.mrb[0].mxu0 %v513
      %v727 = vpop.f32.mrb[0].mxu0
      %v728 = vadd.f32 0.0, %v727
      %v729 = vpop.f32.mrb[0].mxu0
      %730 = vmatprep.mubr.f32.mxu0 %v177
      %731 = vmatmul.mubr.f32.gmra.mrb[0].mxu0 %v514
      %v732 = vpop.f32.mrb[0].mxu0
      %v733 = vadd.f32 0.0, %v732
      %v734 = vpop.f32.mrb[0].mxu0
      %735 = vmatprep.mubr.f32.mxu0 %v178
      %736 = vmatmul.mubr.f32.gmra.mrb[0].mxu0 %v515
      %v737 = vpop.f32.mrb[0].mxu0
      %v738 = vadd.f32 0.0, %v737
      %v739 = vpop.f32.mrb[0].mxu0
      %740 = vdwg.mxu0
      %v741 = vmax.f32 %v583, 0.0
      %v742 = vmax.f32 %v588, 0.0
      %v743 = vmax.f32 %v593, 0.0
      %v744 = vmax.f32 %v598, 0.0
      %v745 = vmax.f32 %v603, 0.0
      %v746 = vmax.f32 %v608, 0.0
      %v747 = vmax.f32 %v613, 0.0
      %v748 = vmax.f32 %v618, 0.0
      %v749 = vmax.f32 %v623, 0.0
      %v750 = vmax.f32 %v628, 0.0
      %v751 = vmax.f32 %v633, 0.0
      %v752 = vmax.f32 %v638, 0.0
      %v753 = vmax.f32 %v643, 0.0
      %v754 = vmax.f32 %v648, 0.0
      %v755 = vmax.f32 %v653, 0.0
      %v756 = vmax.f32 %v658, 0.0
      %v757 = vmax.f32 %v663, 0.0
      %v758 = vmax.f32 %v668, 0.0
      %v759 = vmax.f32 %v673, 0.0
      %v760 = vmax.f32 %v678, 0.0
      %v761 = vmax.f32 %v683, 0.0
      %v762 = vmax.f32 %v688, 0.0
      %v763 = vmax.f32 %v693, 0.0
      %v764 = vmax.f32 %v698, 0.0
      %v765 = vmax.f32 %v703, 0.0
      %v766 = vmax.f32 %v708, 0.0
      %v767 = vmax.f32 %v713, 0.0
      %v768 = vmax.f32 %v718, 0.0
      %v769 = vmax.f32 %v723, 0.0
      %v770 = vmax.f32 %v728, 0.0
      %v771 = vmax.f32 %v733, 0.0
      %v772 = vmax.f32 %v738, 0.0
      %773 = vmatprep.subr.mxu0 0.0
      %774 = vmatpush1.msra.mxu0 %v227
      %775 = vmatprep.subr.mxu0 0.0
      %776 = vmatpush1.msra.mxu0 %v228
      %777 = vmatprep.subr.mxu0 0.0
      %778 = vmatpush1.msra.mxu0 %v229
      %779 = vmatprep.subr.mxu0 0.0
      %780 = vmatpush1.msra.mxu0 %v230
      %781 = vmatprep.subr.mxu0 0.0
      %782 = vmatpush1.msra.mxu0 %v231
      %783 = vmatprep.subr.mxu0 0.0
      %784 = vmatpush1.msra.mxu0 %v232
      %785 = vmatprep.subr.mxu0 0.0
      %786 = vmatpush1.msra.mxu0 %v233
      %787 = vmatprep.subr.mxu0 0.0
      %788 = vmatpush1.msra.mxu0 %v234
      %789 = vmatprep.subr.mxu0 0.0
      %790 = vmatpush1.msra.mxu0 %v235
      %791 = vmatprep.subr.mxu0 0.0
      %792 = vmatpush1.msra.mxu0 %v236
      %793 = vmatprep.subr.mxu0 0.0
      %794 = vmatpush1.msra.mxu0 %v237
      %795 = vmatprep.subr.mxu0 0.0
      %796 = vmatpush1.msra.mxu0 %v238
      %797 = vmatprep.subr.mxu0 0.0
      %798 = vmatpush1.msra.mxu0 %v239
      %799 = vmatprep.subr.mxu0 0.0
      %800 = vmatpush1.msra.mxu0 %v240
      %801 = vmatprep.subr.mxu0 0.0
      %802 = vmatpush1.msra.mxu0 %v241
      %803 = vmatprep.subr.mxu0 0.0
      %804 = vmatpush1.msra.mxu0 %v242
      %805 = vmatprep.subr.mxu0 0.0
      %806 = vmatpush1.msra.mxu0 0.0
      %807 = vmatprep.subr.mxu0 0.0
      %808 = vmatpush1.msra.mxu0 0.0
      %809 = vmatprep.subr.mxu0 0.0
      %810 = vmatpush1.msra.mxu0 0.0
      %811 = vmatprep.subr.mxu0 0.0
      %812 = vmatpush1.msra.mxu0 0.0
      %813 = vmatprep.subr.mxu0 0.0
      %814 = vmatpush1.msra.mxu0 0.0
      %815 = vmatprep.subr.mxu0 0.0
      %816 = vmatpush1.msra.mxu0 0.0
      %817 = vmatprep.subr.mxu0 0.0
      %818 = vmatpush1.msra.mxu0 0.0
      %819 = vmatprep.subr.mxu0 0.0
      %820 = vmatpush1.msra.mxu0 0.0
      %821 = vmatprep.subr.mxu0 0.0
      %822 = vmatpush1.msra.mxu0 0.0
      %823 = vmatprep.subr.mxu0 0.0
      %824 = vmatpush1.msra.mxu0 0.0
      %825 = vmatprep.subr.mxu0 0.0
      %826 = vmatpush1.msra.mxu0 0.0
      %827 = vmatprep.subr.mxu0 0.0
      %828 = vmatpush1.msra.mxu0 0.0
      %829 = vmatprep.subr.mxu0 0.0
      %830 = vmatpush1.msra.mxu0 0.0
      %831 = vmatprep.subr.mxu0 0.0
      %832 = vmatpush1.msra.mxu0 0.0
      %833 = vmatprep.subr.mxu0 0.0
      %834 = vmatpush1.msra.mxu0 0.0
      %835 = vmatprep.subr.mxu0 0.0
      %836 = vmatpush1.msra.mxu0 0.0
      %837 = vmatprep.mubr.f32.mxu0 0.0
      %838 = vmatmul.mubr.f32.gmra.mrb[0].mxu0 %v741
      %v839 = vpop.f32.mrb[0].mxu0
      %v840 = vadd.f32 0.0, %v839
      %v841 = vpop.f32.mrb[0].mxu0
      %842 = vmatprep.mubr.f32.mxu0 0.0
      %843 = vmatmul.mubr.f32.gmra.mrb[0].mxu0 %v742
      %v844 = vpop.f32.mrb[0].mxu0
      %v845 = vadd.f32 0.0, %v844
      %v846 = vpop.f32.mrb[0].mxu0
      %847 = vmatprep.mubr.f32.mxu0 0.0
      %848 = vmatmul.mubr.f32.gmra.mrb[0].mxu0 %v743
      %v849 = vpop.f32.mrb[0].mxu0
      %v850 = vadd.f32 0.0, %v849
      %v851 = vpop.f32.mrb[0].mxu0
      %852 = vmatprep.mubr.f32.mxu0 0.0
      %853 = vmatmul.mubr.f32.gmra.mrb[0].mxu0 %v744
      %v854 = vpop.f32.mrb[0].mxu0
      %v855 = vadd.f32 0.0, %v854
      %v856 = vpop.f32.mrb[0].mxu0
      %857 = vmatprep.mubr.f32.mxu0 0.0
      %858 = vmatmul.mubr.f32.gmra.mrb[0].mxu0 %v745
      %v859 = vpop.f32.mrb[0].mxu0
      %v860 = vadd.f32 0.0, %v859
      %v861 = vpop.f32.mrb[0].mxu0
      %862 = vmatprep.mubr.f32.mxu0 0.0
      %863 = vmatmul.mubr.f32.gmra.mrb[0].mxu0 %v746
      %v864 = vpop.f32.mrb[0].mxu0
      %v865 = vadd.f32 0.0, %v864
      %v866 = vpop.f32.mrb[0].mxu0
      %867 = vmatprep.mubr.f32.mxu0 0.0
      %868 = vmatmul.mubr.f32.gmra.mrb[0].mxu0 %v747
      %v869 = vpop.f32.mrb[0].mxu0
      %v870 = vadd.f32 0.0, %v869
      %v871 = vpop.f32.mrb[0].mxu0
      %872 = vmatprep.mubr.f32.mxu0 0.0
      %873 = vmatmul.mubr.f32.gmra.mrb[0].mxu0 %v748
      %v874 = vpop.f32.mrb[0].mxu0
      %v875 = vadd.f32 0.0, %v874
      %v876 = vpop.f32.mrb[0].mxu0
      %877 = vmatprep.mubr.f32.mxu0 0.0
      %878 = vmatmul.mubr.f32.gmra.mrb[0].mxu0 %v749
      %v879 = vpop.f32.mrb[0].mxu0
      %v880 = vadd.f32 0.0, %v879
      %v881 = vpop.f32.mrb[0].mxu0
      %882 = vmatprep.mubr.f32.mxu0 0.0
      %883 = vmatmul.mubr.f32.gmra.mrb[0].mxu0 %v750
      %v884 = vpop.f32.mrb[0].mxu0
      %v885 = vadd.f32 0.0, %v884
      %v886 = vpop.f32.mrb[0].mxu0
      %887 = vmatprep.mubr.f32.mxu0 0.0
      %888 = vmatmul.mubr.f32.gmra.mrb[0].mxu0 %v751
      %v889 = vpop.f32.mrb[0].mxu0
      %v890 = vadd.f32 0.0, %v889
      %v891 = vpop.f32.mrb[0].mxu0
      %892 = vmatprep.mubr.f32.mxu0 0.0
      %893 = vmatmul.mubr.f32.gmra.mrb[0].mxu0 %v752
      %v894 = vpop.f32.mrb[0].mxu0
      %v895 = vadd.f32 0.0, %v894
      %v896 = vpop.f32.mrb[0].mxu0
      %897 = vmatprep.mubr.f32.mxu0 0.0
      %898 = vmatmul.mubr.f32.gmra.mrb[0].mxu0 %v753
      %v899 = vpop.f32.mrb[0].mxu0
      %v900 = vadd.f32 0.0, %v899
      %v901 = vpop.f32.mrb[0].mxu0
      %902 = vmatprep.mubr.f32.mxu0 0.0
      %903 = vmatmul.mubr.f32.gmra.mrb[0].mxu0 %v754
      %v904 = vpop.f32.mrb[0].mxu0
      %v905 = vadd.f32 0.0, %v904
      %v906 = vpop.f32.mrb[0].mxu0
      %907 = vmatprep.mubr.f32.mxu0 0.0
      %908 = vmatmul.mubr.f32.gmra.mrb[0].mxu0 %v755
      %v909 = vpop.f32.mrb[0].mxu0
      %v910 = vadd.f32 0.0, %v909
      %v911 = vpop.f32.mrb[0].mxu0
      %912 = vmatprep.mubr.f32.mxu0 0.0
      %913 = vmatmul.mubr.f32.gmra.mrb[0].mxu0 %v756
      %v914 = vpop.f32.mrb[0].mxu0
      %v915 = vadd.f32 0.0, %v914
      %v916 = vpop.f32.mrb[0].mxu0
      %917 = vmatprep.mubr.f32.mxu0 0.0
      %918 = vmatmul.mubr.f32.gmra.mrb[0].mxu0 %v757
      %v919 = vpop.f32.mrb[0].mxu0
      %v920 = vadd.f32 0.0, %v919
      %v921 = vpop.f32.mrb[0].mxu0
      %922 = vmatprep.mubr.f32.mxu0 0.0
      %923 = vmatmul.mubr.f32.gmra.mrb[0].mxu0 %v758
      %v924 = vpop.f32.mrb[0].mxu0
      %v925 = vadd.f32 0.0, %v924
      %v926 = vpop.f32.mrb[0].mxu0
      %927 = vmatprep.mubr.f32.mxu0 0.0
      %928 = vmatmul.mubr.f32.gmra.mrb[0].mxu0 %v759
      %v929 = vpop.f32.mrb[0].mxu0
      %v930 = vadd.f32 0.0, %v929
      %v931 = vpop.f32.mrb[0].mxu0
      %932 = vmatprep.mubr.f32.mxu0 0.0
      %933 = vmatmul.mubr.f32.gmra.mrb[0].mxu0 %v760
      %v934 = vpop.f32.mrb[0].mxu0
      %v935 = vadd.f32 0.0, %v934
      %v936 = vpop.f32.mrb[0].mxu0
      %937 = vmatprep.mubr.f32.mxu0 0.0
      %938 = vmatmul.mubr.f32.gmra.mrb[0].mxu0 %v761
      %v939 = vpop.f32.mrb[0].mxu0
      %v940 = vadd.f32 0.0, %v939
      %v941 = vpop.f32.mrb[0].mxu0
      %942 = vmatprep.mubr.f32.mxu0 0.0
      %943 = vmatmul.mubr.f32.gmra.mrb[0].mxu0 %v762
      %v944 = vpop.f32.mrb[0].mxu0
      %v945 = vadd.f32 0.0, %v944
      %v946 = vpop.f32.mrb[0].mxu0
      %947 = vmatprep.mubr.f32.mxu0 0.0
      %948 = vmatmul.mubr.f32.gmra.mrb[0].mxu0 %v763
      %v949 = vpop.f32.mrb[0].mxu0
      %v950 = vadd.f32 0.0, %v949
      %v951 = vpop.f32.mrb[0].mxu0
      %952 = vmatprep.mubr.f32.mxu0 0.0
      %953 = vmatmul.mubr.f32.gmra.mrb[0].mxu0 %v764
      %v954 = vpop.f32.mrb[0].mxu0
      %v955 = vadd.f32 0.0, %v954
      %v956 = vpop.f32.mrb[0].mxu0
      %957 = vmatprep.mubr.f32.mxu0 0.0
      %958 = vmatmul.mubr.f32.gmra.mrb[0].mxu0 %v765
      %v959 = vpop.f32.mrb[0].mxu0
      %v960 = vadd.f32 0.0, %v959
      %v961 = vpop.f32.mrb[0].mxu0
      %962 = vmatprep.mubr.f32.mxu0 0.0
      %963 = vmatmul.mubr.f32.gmra.mrb[0].mxu0 %v766
      %v964 = vpop.f32.mrb[0].mxu0
      %v965 = vadd.f32 0.0, %v964
      %v966 = vpop.f32.mrb[0].mxu0
      %967 = vmatprep.mubr.f32.mxu0 0.0
      %968 = vmatmul.mubr.f32.gmra.mrb[0].mxu0 %v767
      %v969 = vpop.f32.mrb[0].mxu0
      %v970 = vadd.f32 0.0, %v969
      %v971 = vpop.f32.mrb[0].mxu0
      %972 = vmatprep.mubr.f32.mxu0 0.0
      %973 = vmatmul.mubr.f32.gmra.mrb[0].mxu0 %v768
      %v974 = vpop.f32.mrb[0].mxu0
      %v975 = vadd.f32 0.0, %v974
      %v976 = vpop.f32.mrb[0].mxu0
      %977 = vmatprep.mubr.f32.mxu0 0.0
      %978 = vmatmul.mubr.f32.gmra.mrb[0].mxu0 %v769
      %v979 = vpop.f32.mrb[0].mxu0
      %v980 = vadd.f32 0.0, %v979
      %v981 = vpop.f32.mrb[0].mxu0
      %982 = vmatprep.mubr.f32.mxu0 0.0
      %983 = vmatmul.mubr.f32.gmra.mrb[0].mxu0 %v770
      %v984 = vpop.f32.mrb[0].mxu0
      %v985 = vadd.f32 0.0, %v984
      %v986 = vpop.f32.mrb[0].mxu0
      %987 = vmatprep.mubr.f32.mxu0 0.0
      %988 = vmatmul.mubr.f32.gmra.mrb[0].mxu0 %v771
      %v989 = vpop.f32.mrb[0].mxu0
      %v990 = vadd.f32 0.0, %v989
      %v991 = vpop.f32.mrb[0].mxu0
      %992 = vmatprep.mubr.f32.mxu0 0.0
      %993 = vmatmul.mubr.f32.gmra.mrb[0].mxu0 %v772
      %v994 = vpop.f32.mrb[0].mxu0
      %v995 = vadd.f32 0.0, %v994
      %v996 = vpop.f32.mrb[0].mxu0
      %997 = vdwg.mxu0
      %v998 = vmax.f32 %v840, 0.0
      %v999 = vmax.f32 %v845, 0.0
      %v1000 = vmax.f32 %v850, 0.0
      %v1001 = vmax.f32 %v855, 0.0
      %v1002 = vmax.f32 %v860, 0.0
      %v1003 = vmax.f32 %v865, 0.0
      %v1004 = vmax.f32 %v870, 0.0
      %v1005 = vmax.f32 %v875, 0.0
      %v1006 = vmax.f32 %v880, 0.0
      %v1007 = vmax.f32 %v885, 0.0
      %v1008 = vmax.f32 %v890, 0.0
      %v1009 = vmax.f32 %v895, 0.0
      %v1010 = vmax.f32 %v900, 0.0
      %v1011 = vmax.f32 %v905, 0.0
      %v1012 = vmax.f32 %v910, 0.0
      %v1013 = vmax.f32 %v915, 0.0
      %v1014 = vmax.f32 %v920, 0.0
      %v1015 = vmax.f32 %v925, 0.0
      %v1016 = vmax.f32 %v930, 0.0
      %v1017 = vmax.f32 %v935, 0.0
      %v1018 = vmax.f32 %v940, 0.0
      %v1019 = vmax.f32 %v945, 0.0
      %v1020 = vmax.f32 %v950, 0.0
      %v1021 = vmax.f32 %v955, 0.0
      %v1022 = vmax.f32 %v960, 0.0
      %v1023 = vmax.f32 %v965, 0.0
      %v1024 = vmax.f32 %v970, 0.0
      %v1025 = vmax.f32 %v975, 0.0
      %v1026 = vmax.f32 %v980, 0.0
      %v1027 = vmax.f32 %v985, 0.0
      %v1028 = vmax.f32 %v990, 0.0
      %v1029 = vmax.f32 %v995, 0.0
      %1030 = vmatprep.subr.mxu0 0.0
      %1031 = vmatpush1.msra.mxu0 %v243
      %1032 = vmatprep.subr.mxu0 0.0
      %1033 = vmatpush1.msra.mxu0 %v244
      %1034 = vmatprep.subr.mxu0 0.0
      %1035 = vmatpush1.msra.mxu0 %v245
      %1036 = vmatprep.subr.mxu0 0.0
      %1037 = vmatpush1.msra.mxu0 %v246
      %1038 = vmatprep.subr.mxu0 0.0
      %1039 = vmatpush1.msra.mxu0 %v247
      %1040 = vmatprep.subr.mxu0 0.0
      %1041 = vmatpush1.msra.mxu0 %v248
      %1042 = vmatprep.subr.mxu0 0.0
      %1043 = vmatpush1.msra.mxu0 %v249
      %1044 = vmatprep.subr.mxu0 0.0
      %1045 = vmatpush1.msra.mxu0 %v250
      %1046 = vmatprep.subr.mxu0 0.0
      %1047 = vmatpush1.msra.mxu0 %v251
      %1048 = vmatprep.subr.mxu0 0.0
      %1049 = vmatpush1.msra.mxu0 %v252
      %1050 = vmatprep.subr.mxu0 0.0
      %1051 = vmatpush1.msra.mxu0 %v253
      %1052 = vmatprep.subr.mxu0 0.0
      %1053 = vmatpush1.msra.mxu0 %v254
      %1054 = vmatprep.subr.mxu0 0.0
      %1055 = vmatpush1.msra.mxu0 %v255
      %1056 = vmatprep.subr.mxu0 0.0
      %1057 = vmatpush1.msra.mxu0 %v256
      %1058 = vmatprep.subr.mxu0 0.0
      %1059 = vmatpush1.msra.mxu0 %v257
      %1060 = vmatprep.subr.mxu0 0.0
      %1061 = vmatpush1.msra.mxu0 %v258
      %1062 = vmatprep.subr.mxu0 0.0
      %1063 = vmatpush1.msra.mxu0 0.0
      %1064 = vmatprep.subr.mxu0 0.0
      %1065 = vmatpush1.msra.mxu0 0.0
      %1066 = vmatprep.subr.mxu0 0.0
      %1067 = vmatpush1.msra.mxu0 0.0
      %1068 = vmatprep.subr.mxu0 0.0
      %1069 = vmatpush1.msra.mxu0 0.0
      %1070 = vmatprep.subr.mxu0 0.0
      %1071 = vmatpush1.msra.mxu0 0.0
      %1072 = vmatprep.subr.mxu0 0.0
      %1073 = vmatpush1.msra.mxu0 0.0
      %1074 = vmatprep.subr.mxu0 0.0
      %1075 = vmatpush1.msra.mxu0 0.0
      %1076 = vmatprep.subr.mxu0 0.0
      %1077 = vmatpush1.msra.mxu0 0.0
      %1078 = vmatprep.subr.mxu0 0.0
      %1079 = vmatpush1.msra.mxu0 0.0
      %1080 = vmatprep.subr.mxu0 0.0
      %1081 = vmatpush1.msra.mxu0 0.0
      %1082 = vmatprep.subr.mxu0 0.0
      %1083 = vmatpush1.msra.mxu0 0.0
      %1084 = vmatprep.subr.mxu0 0.0
      %1085 = vmatpush1.msra.mxu0 0.0
      %1086 = vmatprep.subr.mxu0 0.0
      %1087 = vmatpush1.msra.mxu0 0.0
      %1088 = vmatprep.subr.mxu0 0.0
      %1089 = vmatpush1.msra.mxu0 0.0
      %1090 = vmatprep.subr.mxu0 0.0
      %1091 = vmatpush1.msra.mxu0 0.0
      %1092 = vmatprep.subr.mxu0 0.0
      %1093 = vmatpush1.msra.mxu0 0.0
      %1094 = vmatprep.mubr.f32.mxu0 0.0
      %1095 = vmatmul.mubr.f32.gmra.mrb[0].mxu0 %v998
      %v1096 = vpop.f32.mrb[0].mxu0
      %v1097 = vadd.f32 0.0, %v1096
      %v1098 = vpop.f32.mrb[0].mxu0
      %1099 = vmatprep.mubr.f32.mxu0 0.0
      %1100 = vmatmul.mubr.f32.gmra.mrb[0].mxu0 %v999
      %v1101 = vpop.f32.mrb[0].mxu0
      %v1102 = vadd.f32 0.0, %v1101
      %v1103 = vpop.f32.mrb[0].mxu0
      %1104 = vmatprep.mubr.f32.mxu0 0.0
      %1105 = vmatmul.mubr.f32.gmra.mrb[0].mxu0 %v1000
      %v1106 = vpop.f32.mrb[0].mxu0
      %v1107 = vadd.f32 0.0, %v1106
      %v1108 = vpop.f32.mrb[0].mxu0
      %1109 = vmatprep.mubr.f32.mxu0 0.0
      %1110 = vmatmul.mubr.f32.gmra.mrb[0].mxu0 %v1001
      %v1111 = vpop.f32.mrb[0].mxu0
      %v1112 = vadd.f32 0.0, %v1111
      %v1113 = vpop.f32.mrb[0].mxu0
      %1114 = vmatprep.mubr.f32.mxu0 0.0
      %1115 = vmatmul.mubr.f32.gmra.mrb[0].mxu0 %v1002
      %v1116 = vpop.f32.mrb[0].mxu0
      %v1117 = vadd.f32 0.0, %v1116
      %v1118 = vpop.f32.mrb[0].mxu0
      %1119 = vmatprep.mubr.f32.mxu0 0.0
      %1120 = vmatmul.mubr.f32.gmra.mrb[0].mxu0 %v1003
      %v1121 = vpop.f32.mrb[0].mxu0
      %v1122 = vadd.f32 0.0, %v1121
      %v1123 = vpop.f32.mrb[0].mxu0
      %1124 = vmatprep.mubr.f32.mxu0 0.0
      %1125 = vmatmul.mubr.f32.gmra.mrb[0].mxu0 %v1004
      %v1126 = vpop.f32.mrb[0].mxu0
      %v1127 = vadd.f32 0.0, %v1126
      %v1128 = vpop.f32.mrb[0].mxu0
      %1129 = vmatprep.mubr.f32.mxu0 0.0
      %1130 = vmatmul.mubr.f32.gmra.mrb[0].mxu0 %v1005
      %v1131 = vpop.f32.mrb[0].mxu0
      %v1132 = vadd.f32 0.0, %v1131
      %v1133 = vpop.f32.mrb[0].mxu0
      %1134 = vmatprep.mubr.f32.mxu0 0.0
      %1135 = vmatmul.mubr.f32.gmra.mrb[0].mxu0 %v1006
      %v1136 = vpop.f32.mrb[0].mxu0
      %v1137 = vadd.f32 0.0, %v1136
      %v1138 = vpop.f32.mrb[0].mxu0
      %1139 = vmatprep.mubr.f32.mxu0 0.0
      %1140 = vmatmul.mubr.f32.gmra.mrb[0].mxu0 %v1007
      %v1141 = vpop.f32.mrb[0].mxu0
      %v1142 = vadd.f32 0.0, %v1141
      %v1143 = vpop.f32.mrb[0].mxu0
      %1144 = vmatprep.mubr.f32.mxu0 0.0
      %1145 = vmatmul.mubr.f32.gmra.mrb[0].mxu0 %v1008
      %v1146 = vpop.f32.mrb[0].mxu0
      %v1147 = vadd.f32 0.0, %v1146
      %v1148 = vpop.f32.mrb[0].mxu0
      %1149 = vmatprep.mubr.f32.mxu0 0.0
      %1150 = vmatmul.mubr.f32.gmra.mrb[0].mxu0 %v1009
      %v1151 = vpop.f32.mrb[0].mxu0
      %v1152 = vadd.f32 0.0, %v1151
      %v1153 = vpop.f32.mrb[0].mxu0
      %1154 = vmatprep.mubr.f32.mxu0 0.0
      %1155 = vmatmul.mubr.f32.gmra.mrb[0].mxu0 %v1010
      %v1156 = vpop.f32.mrb[0].mxu0
      %v1157 = vadd.f32 0.0, %v1156
      %v1158 = vpop.f32.mrb[0].mxu0
      %1159 = vmatprep.mubr.f32.mxu0 0.0
      %1160 = vmatmul.mubr.f32.gmra.mrb[0].mxu0 %v1011
      %v1161 = vpop.f32.mrb[0].mxu0
      %v1162 = vadd.f32 0.0, %v1161
      %v1163 = vpop.f32.mrb[0].mxu0
      %1164 = vmatprep.mubr.f32.mxu0 0.0
      %1165 = vmatmul.mubr.f32.gmra.mrb[0].mxu0 %v1012
      %v1166 = vpop.f32.mrb[0].mxu0
      %v1167 = vadd.f32 0.0, %v1166
      %v1168 = vpop.f32.mrb[0].mxu0
      %1169 = vmatprep.mubr.f32.mxu0 0.0
      %1170 = vmatmul.mubr.f32.gmra.mrb[0].mxu0 %v1013
      %v1171 = vpop.f32.mrb[0].mxu0
      %v1172 = vadd.f32 0.0, %v1171
      %v1173 = vpop.f32.mrb[0].mxu0
      %1174 = vmatprep.mubr.f32.mxu0 0.0
      %1175 = vmatmul.mubr.f32.gmra.mrb[0].mxu0 %v1014
      %v1176 = vpop.f32.mrb[0].mxu0
      %v1177 = vadd.f32 0.0, %v1176
      %v1178 = vpop.f32.mrb[0].mxu0
      %1179 = vmatprep.mubr.f32.mxu0 0.0
      %1180 = vmatmul.mubr.f32.gmra.mrb[0].mxu0 %v1015
      %v1181 = vpop.f32.mrb[0].mxu0
      %v1182 = vadd.f32 0.0, %v1181
      %v1183 = vpop.f32.mrb[0].mxu0
      %1184 = vmatprep.mubr.f32.mxu0 0.0
      %1185 = vmatmul.mubr.f32.gmra.mrb[0].mxu0 %v1016
      %v1186 = vpop.f32.mrb[0].mxu0
      %v1187 = vadd.f32 0.0, %v1186
      %v1188 = vpop.f32.mrb[0].mxu0
      %1189 = vmatprep.mubr.f32.mxu0 0.0
      %1190 = vmatmul.mubr.f32.gmra.mrb[0].mxu0 %v1017
      %v1191 = vpop.f32.mrb[0].mxu0
      %v1192 = vadd.f32 0.0, %v1191
      %v1193 = vpop.f32.mrb[0].mxu0
      %1194 = vmatprep.mubr.f32.mxu0 0.0
      %1195 = vmatmul.mubr.f32.gmra.mrb[0].mxu0 %v1018
      %v1196 = vpop.f32.mrb[0].mxu0
      %v1197 = vadd.f32 0.0, %v1196
      %v1198 = vpop.f32.mrb[0].mxu0
      %1199 = vmatprep.mubr.f32.mxu0 0.0
      %1200 = vmatmul.mubr.f32.gmra.mrb[0].mxu0 %v1019
      %v1201 = vpop.f32.mrb[0].mxu0
      %v1202 = vadd.f32 0.0, %v1201
      %v1203 = vpop.f32.mrb[0].mxu0
      %1204 = vmatprep.mubr.f32.mxu0 0.0
      %1205 = vmatmul.mubr.f32.gmra.mrb[0].mxu0 %v1020
      %v1206 = vpop.f32.mrb[0].mxu0
      %v1207 = vadd.f32 0.0, %v1206
      %v1208 = vpop.f32.mrb[0].mxu0
      %1209 = vmatprep.mubr.f32.mxu0 0.0
      %1210 = vmatmul.mubr.f32.gmra.mrb[0].mxu0 %v1021
      %v1211 = vpop.f32.mrb[0].mxu0
      %v1212 = vadd.f32 0.0, %v1211
      %v1213 = vpop.f32.mrb[0].mxu0
      %1214 = vmatprep.mubr.f32.mxu0 0.0
      %1215 = vmatmul.mubr.f32.gmra.mrb[0].mxu0 %v1022
      %v1216 = vpop.f32.mrb[0].mxu0
      %v1217 = vadd.f32 0.0, %v1216
      %v1218 = vpop.f32.mrb[0].mxu0
      %1219 = vmatprep.mubr.f32.mxu0 0.0
      %1220 = vmatmul.mubr.f32.gmra.mrb[0].mxu0 %v1023
      %v1221 = vpop.f32.mrb[0].mxu0
      %v1222 = vadd.f32 0.0, %v1221
      %v1223 = vpop.f32.mrb[0].mxu0
      %1224 = vmatprep.mubr.f32.mxu0 0.0
      %1225 = vmatmul.mubr.f32.gmra.mrb[0].mxu0 %v1024
      %v1226 = vpop.f32.mrb[0].mxu0
      %v1227 = vadd.f32 0.0, %v1226
      %v1228 = vpop.f32.mrb[0].mxu0
      %1229 = vmatprep.mubr.f32.mxu0 0.0
      %1230 = vmatmul.mubr.f32.gmra.mrb[0].mxu0 %v1025
      %v1231 = vpop.f32.mrb[0].mxu0
      %v1232 = vadd.f32 0.0, %v1231
      %v1233 = vpop.f32.mrb[0].mxu0
      %1234 = vmatprep.mubr.f32.mxu0 0.0
      %1235 = vmatmul.mubr.f32.gmra.mrb[0].mxu0 %v1026
      %v1236 = vpop.f32.mrb[0].mxu0
      %v1237 = vadd.f32 0.0, %v1236
      %v1238 = vpop.f32.mrb[0].mxu0
      %1239 = vmatprep.mubr.f32.mxu0 0.0
      %1240 = vmatmul.mubr.f32.gmra.mrb[0].mxu0 %v1027
      %v1241 = vpop.f32.mrb[0].mxu0
      %v1242 = vadd.f32 0.0, %v1241
      %v1243 = vpop.f32.mrb[0].mxu0
      %1244 = vmatprep.mubr.f32.mxu0 0.0
      %1245 = vmatmul.mubr.f32.gmra.mrb[0].mxu0 %v1028
      %v1246 = vpop.f32.mrb[0].mxu0
      %v1247 = vadd.f32 0.0, %v1246
      %v1248 = vpop.f32.mrb[0].mxu0
      %1249 = vmatprep.mubr.f32.mxu0 0.0
      %1250 = vmatmul.mubr.f32.gmra.mrb[0].mxu0 %v1029
      %v1251 = vpop.f32.mrb[0].mxu0
      %v1252 = vadd.f32 0.0, %v1251
      %v1253 = vpop.f32.mrb[0].mxu0
      %1254 = vdwg.mxu0
      %1255 = vmax.xlane.f32.xlu0 %v1097
      %v1256 = vpop.xlane.xlu0 %1255
      %1257 = vmax.xlane.f32.xlu0 %v1102
      %v1258 = vpop.xlane.xlu0 %1257
      %1259 = vmax.xlane.f32.xlu0 %v1107
      %v1260 = vpop.xlane.xlu0 %1259
      %1261 = vmax.xlane.f32.xlu0 %v1112
      %v1262 = vpop.xlane.xlu0 %1261
      %1263 = vmax.xlane.f32.xlu0 %v1117
      %v1264 = vpop.xlane.xlu0 %1263
      %1265 = vmax.xlane.f32.xlu0 %v1122
      %v1266 = vpop.xlane.xlu0 %1265
      %1267 = vmax.xlane.f32.xlu0 %v1127
      %v1268 = vpop.xlane.xlu0 %1267
      %1269 = vmax.xlane.f32.xlu0 %v1132
      %v1270 = vpop.xlane.xlu0 %1269
      %1271 = vmax.xlane.f32.xlu0 %v1137
      %v1272 = vpop.xlane.xlu0 %1271
      %1273 = vmax.xlane.f32.xlu0 %v1142
      %v1274 = vpop.xlane.xlu0 %1273
      %1275 = vmax.xlane.f32.xlu0 %v1147
      %v1276 = vpop.xlane.xlu0 %1275
      %1277 = vmax.xlane.f32.xlu0 %v1152
      %v1278 = vpop.xlane.xlu0 %1277
      %1279 = vmax.xlane.f32.xlu0 %v1157
      %v1280 = vpop.xlane.xlu0 %1279
      %1281 = vmax.xlane.f32.xlu0 %v1162
      %v1282 = vpop.xlane.xlu0 %1281
      %1283 = vmax.xlane.f32.xlu0 %v1167
      %v1284 = vpop.xlane.xlu0 %1283
      %1285 = vmax.xlane.f32.xlu0 %v1172
      %v1286 = vpop.xlane.xlu0 %1285
      %1287 = vmax.xlane.f32.xlu0 %v1177
      %v1288 = vpop.xlane.xlu0 %1287
      %1289 = vmax.xlane.f32.xlu0 %v1182
      %v1290 = vpop.xlane.xlu0 %1289
      %1291 = vmax.xlane.f32.xlu0 %v1187
      %v1292 = vpop.xlane.xlu0 %1291
      %1293 = vmax.xlane.f32.xlu0 %v1192
      %v1294 = vpop.xlane.xlu0 %1293
      %1295 = vmax.xlane.f32.xlu0 %v1197
      %v1296 = vpop.xlane.xlu0 %1295
      %1297 = vmax.xlane.f32.xlu0 %v1202
      %v1298 = vpop.xlane.xlu0 %1297
      %1299 = vmax.xlane.f32.xlu0 %v1207
      %v1300 = vpop.xlane.xlu0 %1299
      %1301 = vmax.xlane.f32.xlu0 %v1212
      %v1302 = vpop.xlane.xlu0 %1301
      %1303 = vmax.xlane.f32.xlu0 %v1217
      %v1304 = vpop.xlane.xlu0 %1303
      %1305 = vmax.xlane.f32.xlu0 %v1222
      %v1306 = vpop.xlane.xlu0 %1305
      %1307 = vmax.xlane.f32.xlu0 %v1227
      %v1308 = vpop.xlane.xlu0 %1307
      %1309 = vmax.xlane.f32.xlu0 %v1232
      %v1310 = vpop.xlane.xlu0 %1309
      %1311 = vmax.xlane.f32.xlu0 %v1237
      %v1312 = vpop.xlane.xlu0 %1311
      %1313 = vmax.xlane.f32.xlu0 %v1242
      %v1314 = vpop.xlane.xlu0 %1313
      %1315 = vmax.xlane.f32.xlu0 %v1247
      %v1316 = vpop.xlane.xlu0 %1315
      %1317 = vmax.xlane.f32.xlu0 %v1252
      %v1318 = vpop.xlane.xlu0 %1317
      %v1319 = vsub.f32 %v1097, %v1256
      %v1320 = vsub.f32 %v1102, %v1258
      %v1321 = vsub.f32 %v1107, %v1260
      %v1322 = vsub.f32 %v1112, %v1262
      %v1323 = vsub.f32 %v1117, %v1264
      %v1324 = vsub.f32 %v1122, %v1266
      %v1325 = vsub.f32 %v1127, %v1268
      %v1326 = vsub.f32 %v1132, %v1270
      %v1327 = vsub.f32 %v1137, %v1272
      %v1328 = vsub.f32 %v1142, %v1274
      %v1329 = vsub.f32 %v1147, %v1276
      %v1330 = vsub.f32 %v1152, %v1278
      %v1331 = vsub.f32 %v1157, %v1280
      %v1332 = vsub.f32 %v1162, %v1282
      %v1333 = vsub.f32 %v1167, %v1284
      %v1334 = vsub.f32 %v1172, %v1286
      %v1335 = vsub.f32 %v1177, %v1288
      %v1336 = vsub.f32 %v1182, %v1290
      %v1337 = vsub.f32 %v1187, %v1292
      %v1338 = vsub.f32 %v1192, %v1294
      %v1339 = vsub.f32 %v1197, %v1296
      %v1340 = vsub.f32 %v1202, %v1298
      %v1341 = vsub.f32 %v1207, %v1300
      %v1342 = vsub.f32 %v1212, %v1302
      %v1343 = vsub.f32 %v1217, %v1304
      %v1344 = vsub.f32 %v1222, %v1306
      %v1345 = vsub.f32 %v1227, %v1308
      %v1346 = vsub.f32 %v1232, %v1310
      %v1347 = vsub.f32 %v1237, %v1312
      %v1348 = vsub.f32 %v1242, %v1314
      %v1349 = vsub.f32 %v1247, %v1316
      %v1350 = vsub.f32 %v1252, %v1318
      %v1351 = vmul.f32 %v1319, 1.442695
      %v1352 = vpow.pop %v1351
      %v1353 = vmul.f32 %v1320, 1.442695
      %v1354 = vpow.pop %v1353
      %v1355 = vmul.f32 %v1321, 1.442695
      %v1356 = vpow.pop %v1355
      %v1357 = vmul.f32 %v1322, 1.442695
      %v1358 = vpow.pop %v1357
      %v1359 = vmul.f32 %v1323, 1.442695
      %v1360 = vpow.pop %v1359
      %v1361 = vmul.f32 %v1324, 1.442695
      %v1362 = vpow.pop %v1361
      %v1363 = vmul.f32 %v1325, 1.442695
      %v1364 = vpow.pop %v1363
      %v1365 = vmul.f32 %v1326, 1.442695
      %v1366 = vpow.pop %v1365
      %v1367 = vmul.f32 %v1327, 1.442695
      %v1368 = vpow.pop %v1367
      %v1369 = vmul.f32 %v1328, 1.442695
      %v1370 = vpow.pop %v1369
      %v1371 = vmul.f32 %v1329, 1.442695
      %v1372 = vpow.pop %v1371
      %v1373 = vmul.f32 %v1330, 1.442695
      %v1374 = vpow.pop %v1373
      %v1375 = vmul.f32 %v1331, 1.442695
      %v1376 = vpow.pop %v1375
      %v1377 = vmul.f32 %v1332, 1.442695
      %v1378 = vpow.pop %v1377
      %v1379 = vmul.f32 %v1333, 1.442695
      %v1380 = vpow.pop %v1379
      %v1381 = vmul.f32 %v1334, 1.442695
      %v1382 = vpow.pop %v1381
      %v1383 = vmul.f32 %v1335, 1.442695
      %v1384 = vpow.pop %v1383
      %v1385 = vmul.f32 %v1336, 1.442695
      %v1386 = vpow.pop %v1385
      %v1387 = vmul.f32 %v1337, 1.442695
      %v1388 = vpow.pop %v1387
      %v1389 = vmul.f32 %v1338, 1.442695
      %v1390 = vpow.pop %v1389
      %v1391 = vmul.f32 %v1339, 1.442695
      %v1392 = vpow.pop %v1391
      %v1393 = vmul.f32 %v1340, 1.442695
      %v1394 = vpow.pop %v1393
      %v1395 = vmul.f32 %v1341, 1.442695
      %v1396 = vpow.pop %v1395
      %v1397 = vmul.f32 %v1342, 1.442695
      %v1398 = vpow.pop %v1397
      %v1399 = vmul.f32 %v1343, 1.442695
      %v1400 = vpow.pop %v1399
      %v1401 = vmul.f32 %v1344, 1.442695
      %v1402 = vpow.pop %v1401
      %v1403 = vmul.f32 %v1345, 1.442695
      %v1404 = vpow.pop %v1403
      %v1405 = vmul.f32 %v1346, 1.442695
      %v1406 = vpow.pop %v1405
      %v1407 = vmul.f32 %v1347, 1.442695
      %v1408 = vpow.pop %v1407
      %v1409 = vmul.f32 %v1348, 1.442695
      %v1410 = vpow.pop %v1409
      %v1411 = vmul.f32 %v1349, 1.442695
      %v1412 = vpow.pop %v1411
      %v1413 = vmul.f32 %v1350, 1.442695
      %v1414 = vpow.pop %v1413
      %1415 = vadd.xlane.f32.xlu0 %v1352
      %v1416 = vpop.xlane.xlu0 %1415
      %1417 = vadd.xlane.f32.xlu0 %v1354
      %v1418 = vpop.xlane.xlu0 %1417
      %1419 = vadd.xlane.f32.xlu0 %v1356
      %v1420 = vpop.xlane.xlu0 %1419
      %1421 = vadd.xlane.f32.xlu0 %v1358
      %v1422 = vpop.xlane.xlu0 %1421
      %1423 = vadd.xlane.f32.xlu0 %v1360
      %v1424 = vpop.xlane.xlu0 %1423
      %1425 = vadd.xlane.f32.xlu0 %v1362
      %v1426 = vpop.xlane.xlu0 %1425
      %1427 = vadd.xlane.f32.xlu0 %v1364
      %v1428 = vpop.xlane.xlu0 %1427
      %1429 = vadd.xlane.f32.xlu0 %v1366
      %v1430 = vpop.xlane.xlu0 %1429
      %1431 = vadd.xlane.f32.xlu0 %v1368
      %v1432 = vpop.xlane.xlu0 %1431
      %1433 = vadd.xlane.f32.xlu0 %v1370
      %v1434 = vpop.xlane.xlu0 %1433
      %1435 = vadd.xlane.f32.xlu0 %v1372
      %v1436 = vpop.xlane.xlu0 %1435
      %1437 = vadd.xlane.f32.xlu0 %v1374
      %v1438 = vpop.xlane.xlu0 %1437
      %1439 = vadd.xlane.f32.xlu0 %v1376
      %v1440 = vpop.xlane.xlu0 %1439
      %1441 = vadd.xlane.f32.xlu0 %v1378
      %v1442 = vpop.xlane.xlu0 %1441
      %1443 = vadd.xlane.f32.xlu0 %v1380
      %v1444 = vpop.xlane.xlu0 %1443
      %1445 = vadd.xlane.f32.xlu0 %v1382
      %v1446 = vpop.xlane.xlu0 %1445
      %1447 = vadd.xlane.f32.xlu0 %v1384
      %v1448 = vpop.xlane.xlu0 %1447
      %1449 = vadd.xlane.f32.xlu0 %v1386
      %v1450 = vpop.xlane.xlu0 %1449
      %1451 = vadd.xlane.f32.xlu0 %v1388
      %v1452 = vpop.xlane.xlu0 %1451
      %1453 = vadd.xlane.f32.xlu0 %v1390
      %v1454 = vpop.xlane.xlu0 %1453
      %1455 = vadd.xlane.f32.xlu0 %v1392
      %v1456 = vpop.xlane.xlu0 %1455
      %1457 = vadd.xlane.f32.xlu0 %v1394
      %v1458 = vpop.xlane.xlu0 %1457
      %1459 = vadd.xlane.f32.xlu0 %v1396
      %v1460 = vpop.xlane.xlu0 %1459
      %1461 = vadd.xlane.f32.xlu0 %v1398
      %v1462 = vpop.xlane.xlu0 %1461
      %1463 = vadd.xlane.f32.xlu0 %v1400
      %v1464 = vpop.xlane.xlu0 %1463
      %1465 = vadd.xlane.f32.xlu0 %v1402
      %v1466 = vpop.xlane.xlu0 %1465
      %1467 = vadd.xlane.f32.xlu0 %v1404
      %v1468 = vpop.xlane.xlu0 %1467
      %1469 = vadd.xlane.f32.xlu0 %v1406
      %v1470 = vpop.xlane.xlu0 %1469
      %1471 = vadd.xlane.f32.xlu0 %v1408
      %v1472 = vpop.xlane.xlu0 %1471
      %1473 = vadd.xlane.f32.xlu0 %v1410
      %v1474 = vpop.xlane.xlu0 %1473
      %1475 = vadd.xlane.f32.xlu0 %v1412
      %v1476 = vpop.xlane.xlu0 %1475
      %1477 = vadd.xlane.f32.xlu0 %v1414
      %v1478 = vpop.xlane.xlu0 %1477
      %v1479 = vrcp.pop %v1416
      %v1480 = vmul.f32 %v1352, %v1479
      %v1481 = vrcp.pop %v1418
      %v1482 = vmul.f32 %v1354, %v1481
      %v1483 = vrcp.pop %v1420
      %v1484 = vmul.f32 %v1356, %v1483
      %v1485 = vrcp.pop %v1422
      %v1486 = vmul.f32 %v1358, %v1485
      %v1487 = vrcp.pop %v1424
      %v1488 = vmul.f32 %v1360, %v1487
      %v1489 = vrcp.pop %v1426
      %v1490 = vmul.f32 %v1362, %v1489
      %v1491 = vrcp.pop %v1428
      %v1492 = vmul.f32 %v1364, %v1491
      %v1493 = vrcp.pop %v1430
      %v1494 = vmul.f32 %v1366, %v1493
      %v1495 = vrcp.pop %v1432
      %v1496 = vmul.f32 %v1368, %v1495
      %v1497 = vrcp.pop %v1434
      %v1498 = vmul.f32 %v1370, %v1497
      %v1499 = vrcp.pop %v1436
      %v1500 = vmul.f32 %v1372, %v1499
      %v1501 = vrcp.pop %v1438
      %v1502 = vmul.f32 %v1374, %v1501
      %v1503 = vrcp.pop %v1440
      %v1504 = vmul.f32 %v1376, %v1503
      %v1505 = vrcp.pop %v1442
      %v1506 = vmul.f32 %v1378, %v1505
      %v1507 = vrcp.pop %v1444
      %v1508 = vmul.f32 %v1380, %v1507
      %v1509 = vrcp.pop %v1446
      %v1510 = vmul.f32 %v1382, %v1509
      %v1511 = vrcp.pop %v1448
      %v1512 = vmul.f32 %v1384, %v1511
      %v1513 = vrcp.pop %v1450
      %v1514 = vmul.f32 %v1386, %v1513
      %v1515 = vrcp.pop %v1452
      %v1516 = vmul.f32 %v1388, %v1515
      %v1517 = vrcp.pop %v1454
      %v1518 = vmul.f32 %v1390, %v1517
      %v1519 = vrcp.pop %v1456
      %v1520 = vmul.f32 %v1392, %v1519
      %v1521 = vrcp.pop %v1458
      %v1522 = vmul.f32 %v1394, %v1521
      %v1523 = vrcp.pop %v1460
      %v1524 = vmul.f32 %v1396, %v1523
      %v1525 = vrcp.pop %v1462
      %v1526 = vmul.f32 %v1398, %v1525
      %v1527 = vrcp.pop %v1464
      %v1528 = vmul.f32 %v1400, %v1527
      %v1529 = vrcp.pop %v1466
      %v1530 = vmul.f32 %v1402, %v1529
      %v1531 = vrcp.pop %v1468
      %v1532 = vmul.f32 %v1404, %v1531
      %v1533 = vrcp.pop %v1470
      %v1534 = vmul.f32 %v1406, %v1533
      %v1535 = vrcp.pop %v1472
      %v1536 = vmul.f32 %v1408, %v1535
      %v1537 = vrcp.pop %v1474
      %v1538 = vmul.f32 %v1410, %v1537
      %v1539 = vrcp.pop %v1476
      %v1540 = vmul.f32 %v1412, %v1539
      %v1541 = vrcp.pop %v1478
      %v1542 = vmul.f32 %v1414, %v1541
      %1543 = vst [vmem:[%s145] sm:$0xff] %v1480
      %1544 = vst [vmem:[%s145 + $0x8] sm:$0xff] %v1482
      %1545 = vst [vmem:[%s145 + $0x10] sm:$0xff] %v1484
      %1546 = vst [vmem:[%s145 + $0x18] sm:$0xff] %v1486
      %1547 = vst [vmem:[%s145 + $0x20] sm:$0xff] %v1488
      %1548 = vst [vmem:[%s145 + $0x28] sm:$0xff] %v1490
      %1549 = vst [vmem:[%s145 + $0x30] sm:$0xff] %v1492
      %1550 = vst [vmem:[%s145 + $0x38] sm:$0xff] %v1494
      %1551 = vst [vmem:[%s145 + $0x40] sm:$0xff] %v1496
      %1552 = vst [vmem:[%s145 + $0x48] sm:$0xff] %v1498
      %1553 = vst [vmem:[%s145 + $0x50] sm:$0xff] %v1500
      %1554 = vst [vmem:[%s145 + $0x58] sm:$0xff] %v1502
      %1555 = vst [vmem:[%s145 + $0x60] sm:$0xff] %v1504
      %1556 = vst [vmem:[%s145 + $0x68] sm:$0xff] %v1506
      %1557 = vst [vmem:[%s145 + $0x70] sm:$0xff] %v1508
      %1558 = vst [vmem:[%s145 + $0x78] sm:$0xff] %v1510
      %1559 = vst [vmem:[%s145 + $0x80] sm:$0xff] %v1512
      %1560 = vst [vmem:[%s145 + $0x88] sm:$0xff] %v1514
      %1561 = vst [vmem:[%s145 + $0x90] sm:$0xff] %v1516
      %1562 = vst [vmem:[%s145 + $0x98] sm:$0xff] %v1518
      %1563 = vst [vmem:[%s145 + $0xa0] sm:$0xff] %v1520
      %1564 = vst [vmem:[%s145 + $0xa8] sm:$0xff] %v1522
      %1565 = vst [vmem:[%s145 + $0xb0] sm:$0xff] %v1524
      %1566 = vst [vmem:[%s145 + $0xb8] sm:$0xff] %v1526
      %1567 = vst [vmem:[%s145 + $0xc0] sm:$0xff] %v1528
      %1568 = vst [vmem:[%s145 + $0xc8] sm:$0xff] %v1530
      %1569 = vst [vmem:[%s145 + $0xd0] sm:$0xff] %v1532
      %1570 = vst [vmem:[%s145 + $0xd8] sm:$0xff] %v1534
      %1571 = vst [vmem:[%s145 + $0xe0] sm:$0xff] %v1536
      %1572 = vst [vmem:[%s145 + $0xe8] sm:$0xff] %v1538
      %1573 = vst [vmem:[%s145 + $0xf0] sm:$0xff] %v1540
      %1574 = vst [vmem:[%s145 + $0xf8] sm:$0xff] %v1542
      %s1575 = smul.u32 32, %s13
      %p1576 = scmp.lt.s32.totalorder %s1575, 63
      %s1577 = scalar_select %p1576, %s1575, 63
      %s1578 = smul.addr %s1577, 8
      %s1579 = scalar_lea.vmem %s2, %s1578
      // Predicated region
      $region29: #{conv_connect_policy_forward_batched.1} parent=27 // pred_check
        %p1580 = pneg %p78
      $region30: #{conv_connect_policy_forward_batched.1} parent=27 // pred_check_branch
        %1582 = sbr.rel (%p1580) target = $region32
      $region31: #{conv_connect_policy_forward_batched.1} parent=27 // pred_region
        %s1583 = smul.u32 32, %s13
      $region32: #{conv_connect_policy_forward_batched.1} parent=27 // pred_fallthru
        _
    $region28: #{conv_connect_policy_forward_batched.1} parent=5 // pred_fallthru
      _
    %p1584 = scmp.le.s32.totalorder 2, %s8
    // Predicated region
    $region33: #{conv_connect_policy_forward_batched.1} parent=5 // pred_check
      %p1585 = pneg %p1584
    $region34: #{conv_connect_policy_forward_batched.1} parent=5 // pred_check_branch
      %1587 = sbr.rel (%p1585) target = $region36
    $region35: #{conv_connect_policy_forward_batched.1} parent=5 // pred_region
      %s1588 = ssub.s32 %s8, 2
      // Predicated region
      $region37: #{conv_connect_policy_forward_batched.1} parent=35 // pred_check
        %p1589 = pneg %p84
      $region38: #{conv_connect_policy_forward_batched.1} parent=35 // pred_check_branch
        %1591 = sbr.rel (%p1589) target = $region40
      $region39: #{conv_connect_policy_forward_batched.1} parent=35 // pred_region
        %s1592 = smul.u32 32, %s14
        %p1593 = scmp.lt.s32.totalorder %s1592, 63
        %s1594 = scalar_select %p1593, %s1592, 63
        %s1595 = smul.addr %s1594, 8
        %s1596 = scalar_lea.vmem %s2, %s1595
      $region40: #{conv_connect_policy_forward_batched.1} parent=35 // pred_fallthru
        _
    $region36: #{conv_connect_policy_forward_batched.1} parent=5 // pred_fallthru
      _
  $region6: #{conv_connect_policy_forward_batched.1} parent=0 // loop_footer
    %s12 = sadd.s32 1, %s8
  $region7: #{conv_connect_policy_forward_batched.1} parent=0 // loop_footer_branch
    %7 = sbr.rel target = $region3
  $region8: #{conv_connect_policy_forward_batched.1} parent=0 // loop_exit
    _

</llo_original>
